<compile_context>
chip_gen: v6e
topology: v6e:2x2x1
jax: 0.10.0
libtpu: 0.0.40
codegen_flags: <defaults>
</compile_context>

<pallas_src>
import math
import numpy as np
import jax
import jax.numpy as jnp
from jax import lax
from jax.experimental import pallas as pl
from jax.experimental.pallas import tpu as pltpu

# PSF_sdf       = 10*sdf/(49*sqrt(2))   ->  PSF_sdf^2        = K1*((dy)^2+(dx)^2)
K1 = 100.0 / 4802.0
# LR_masking_sdf= 10*sdf/(87*sqrt(2))   ->  LR_masking_sdf^2 = K2*((dy)^2+(dx)^2)
K2 = 100.0 / 15138.0

PAD = 128                    # lane/sublane-dense working width
BIG = 1.0e30                 # out-of-band d^2 sentinel: exp(cb*BIG) underflows to 0
DEPTH_PAD_VALUE = -1.0e9     # depth pad: never wins the max, multiplies exact zeros


# -----------------------------------------------------------------------------
# Host-side precomputed squared-distance constants (sample independent, ~70 KB,
# VMEM-resident inside the kernel via constant index_maps).
# -----------------------------------------------------------------------------
def _build_d2_constants():
    idx = np.arange(PAD)
    a = idx[:, None].astype(np.float64)
    b = idx[None, :].astype(np.float64)
    # symmetric band weight support: |a-b|<=49, both indices inside the 100x100 image
    in_band = (np.abs(a - b) <= 49) & (a < 100) & (b < 100)
    d2_band = np.where(in_band, (a - b) ** 2, BIG).astype(np.float32)      # (128,128)

    centers = 12.0 + 25.0 * np.arange(4)                                    # LR taxel centres
    y = idx.astype(np.float64)
    d2_lr_row = np.where(y[None, :] < 100,
                         (y[None, :] - centers[:, None]) ** 2, BIG).astype(np.float32)  # (4,128)
    d2_lr_col = np.where(y[:, None] < 100,
                         (y[:, None] - centers[None, :]) ** 2, BIG).astype(np.float32)  # (128,4)

    d2_psf_1d = np.where(idx < 99, (idx - 49.0) ** 2, BIG)
    d2_psf_row = d2_psf_1d[None, :].astype(np.float32)                      # (1,128)
    d2_psf_col = d2_psf_1d[:, None].astype(np.float32)                      # (128,1)
    return d2_band, d2_lr_row, d2_lr_col, d2_psf_col, d2_psf_row


_D2_CONSTS = _build_d2_constants()


# -----------------------------------------------------------------------------
# Deterministic synthetic MLP parameters (nn.Linear weight ~ N(0, 0.03)).
# -----------------------------------------------------------------------------
def init_mlp_params(key):
    dims = [(48, 256), (256, 1024), (1024, 256), (256, 3)]
    keys = jax.random.split(key, 2 * len(dims))
    params = []
    for idx, (fin, fout) in enumerate(dims):
        kw, kb = keys[2 * idx], keys[2 * idx + 1]
        w = 0.03 * jax.random.normal(kw, (fin, fout), dtype=jnp.float32)
        bound = 1.0 / math.sqrt(fin)
        b = jax.random.uniform(kb, (1, fout), dtype=jnp.float32,
                               minval=-bound, maxval=bound)
        params.extend([w, b])
    return tuple(params)


# -----------------------------------------------------------------------------
# MLP (Flatten -> Linear/ReLU x3 -> Linear -> Softplus).
# Left to XLA per perf review: at M=B(<=2) the matmuls are ~1 MFLOP total and a
# dedicated pallas_call costs more (launch + 2.1 MB weight staging) than it saves.
# -----------------------------------------------------------------------------
def mlp_forward(x_flat, params):
    w1, b1, w2, b2, w3, b3, w4, b4 = params
    h = jax.nn.relu(jnp.dot(x_flat, w1) + b1)
    h = jax.nn.relu(jnp.dot(h, w2) + b2)
    h = jax.nn.relu(jnp.dot(h, w3) + b3)
    return jax.nn.softplus(jnp.dot(h, w4) + b4)


# -----------------------------------------------------------------------------
# Fused per-sample kernel: PSF + separable conv + depth-mask fix-up + degradation.
# grid = (B,), one sample per grid step, everything at a lane-dense width of 128.
# -----------------------------------------------------------------------------
def tpsf_main_kernel(ab_ref, depth_ref, band_ref, lrrow_ref, lrcol_ref,
                     psfcol_ref, psfrow_ref, hr_ref, lr_ref, psf_ref):
    b = pl.program_id(0)
    alpha = ab_ref[b, 0]
    beta = ab_ref[b, 1]
    g = ab_ref[b, 2]

    # scalar exponent scales (fold the divide out of the vector fields)
    cb = -K1 / (beta * beta)
    cg = -K2 / g

    # ---- PSF output: separable outer product (2*128 exps, rest is VPU muls) ---
    g_col = jnp.exp(cb * psfcol_ref[...])            # (128, 1), rows >=99 are 0
    g_row = jnp.exp(cb * psfrow_ref[...])            # (1, 128), cols >=99 are 0
    psf_ref[0] = (alpha * g_col) * g_row             # (128, 128); [:99,:99] valid

    # ---- Separable conv: ZeroPad2d(48) + conv2d(padding=1) == two matmuls -----
    # Symmetric band-Toeplitz Gaussian weight; exactly 0 outside the valid band,
    # so the depth pad rows/cols (DEPTH_PAD_VALUE) never contribute.
    w = jnp.exp(cb * band_ref[...])                  # (128, 128)
    depth = depth_ref[0]                             # (128, 128), pad = -1e9
    tmp = jnp.dot(depth, w, preferred_element_type=jnp.float32)   # column pass
    hr = alpha * jnp.dot(w, tmp, preferred_element_type=jnp.float32)  # row pass
    # hr is exactly 0 outside [:100,:100]

    # ---- Depth-mask fix-up (HR[mask] = (HR with mask zeroed).max()) -----------
    dmax = jnp.max(depth)                            # pad value never wins
    dmask = depth > (dmax - 0.001)                   # pad region is always False
    tmpv = jnp.where(dmask, 0.0, hr)
    hr = jnp.where(dmask, jnp.max(tmpv), hr)
    hr_ref[0] = hr                                   # fully lane/sublane-dense store

    # ---- Degradation: separable masking + closed-form min/max normalisation ---
    rm = jnp.exp(cg * lrrow_ref[...])                # (4, 128), cols >=100 are 0
    rmT = jnp.exp(cg * lrcol_ref[...])               # (128, 4), rows >=100 are 0
    t1 = jnp.dot(rm, hr, preferred_element_type=jnp.float32)      # (4, 128)
    s = jnp.dot(t1, rmT, preferred_element_type=jnp.float32)      # (4, 4) = sum(m*HR)

    sum_hr = jnp.sum(hr)
    # masking.max() = 1, masking.min() = exp(-100/gamma)  (single exp, (1,1))
    mmin = jnp.exp(jnp.full((1, 1), -100.0, jnp.float32) / g)
    lr_ref[0] = (s - mmin * sum_hr) / (1.0 - mmin) * 0.0001


def main_forward(alphaBeta, depth_padded):
    B = depth_padded.shape[0]
    d2_band, d2_lr_row, d2_lr_col, d2_psf_col, d2_psf_row = _D2_CONSTS

    def const_spec(shape):
        return pl.BlockSpec(shape, lambda b: (0, 0))   # VMEM-resident constant

    return pl.pallas_call(
        tpsf_main_kernel,
        out_shape=(jax.ShapeDtypeStruct((B, PAD, PAD), jnp.float32),   # HR (padded)
                   jax.ShapeDtypeStruct((B, 4, 4), jnp.float32),       # LR degrade
                   jax.ShapeDtypeStruct((B, PAD, PAD), jnp.float32)),  # PSF (padded)
        grid=(B,),
        in_specs=[
            pl.BlockSpec(memory_space=pltpu.MemorySpace.SMEM),         # alphaBeta (B,3)
            pl.BlockSpec((1, PAD, PAD), lambda b: (b, 0, 0)),          # depth (padded)
            const_spec((PAD, PAD)),                                    # d2 band weight
            const_spec((4, PAD)),                                      # d2 LR rows
            const_spec((PAD, 4)),                                      # d2 LR cols
            const_spec((PAD, 1)),                                      # d2 PSF col
            const_spec((1, PAD)),                                      # d2 PSF row
        ],
        out_specs=(
            pl.BlockSpec((1, PAD, PAD), lambda b: (b, 0, 0)),
            pl.BlockSpec((1, 4, 4), lambda b: (b, 0, 0)),
            pl.BlockSpec((1, PAD, PAD), lambda b: (b, 0, 0)),
        ),
        compiler_params=pltpu.CompilerParams(
            dimension_semantics=("parallel",)),                        # megacore on v7x
    )(alphaBeta, depth_padded, d2_band, d2_lr_row, d2_lr_col, d2_psf_col, d2_psf_row)


# -----------------------------------------------------------------------------
# Full forward (mirrors tPSFNet.forward)
# -----------------------------------------------------------------------------
def tpsf_forward(x, depth, params):
    B = x.shape[0]
    assert x.shape[0] == depth.shape[0]
    x_flat = x.reshape(B, -1).astype(jnp.float32)            # nn.Flatten (NCHW order)
    alphaBeta = mlp_forward(x_flat, params)                   # (B, 3), XLA
    d2 = depth[:, 0].astype(jnp.float32)                      # (B, 100, 100)
    d_pad = jnp.pad(d2, ((0, 0), (0, PAD - 100), (0, PAD - 100)),
                    constant_values=DEPTH_PAD_VALUE)          # lane/sublane-dense
    hr, lr, psf = main_forward(alphaBeta, d_pad)
    return (hr[:, None, :100, :100],     # ret_HR_tactile     (B,1,100,100)
            lr[:, None],                 # LR_tactile_degrade (B,1,4,4)
            psf[:, None, :99, :99],      # ret_psf            (B,1,99,99)
            alphaBeta[:, None, :])       # ret_alphaBeta      (B,1,3)


# -----------------------------------------------------------------------------
# Pure-JAX reference for the heavy path (given alphaBeta), f32 HIGHEST precision.
# -----------------------------------------------------------------------------
def reference_heavy(ab, depth):
    idx99 = jnp.arange(99, dtype=jnp.float32)
    sdf = jnp.sqrt((idx99[:, None] - 49.0) ** 2 + (idx99[None, :] - 49.0) ** 2)
    psf_sdf = 10.0 * (sdf - sdf.min()) / (sdf.max() - sdf.min())

    idx100 = jnp.arange(100, dtype=jnp.float32)
    cc = 12.0 + 25.0 * jnp.arange(4, dtype=jnp.float32)
    lr_sdf = jnp.sqrt((idx100[None, None, :, None] - cc[:, None, None, None]) ** 2 +
                      (idx100[None, None, None, :] - cc[None, :, None, None]) ** 2)
    lr_sdf = 10.0 * (lr_sdf - lr_sdf.min()) / (lr_sdf.max() - lr_sdf.min())

    hrs, lrs, psfs = [], [], []
    for i in range(ab.shape[0]):
        a, bta, g = ab[i, 0], ab[i, 1], ab[i, 2]
        psf = a * jnp.exp(-psf_sdf ** 2 / (bta * bta))
        d = depth[i, 0]
        hr = lax.conv_general_dilated(
            d[None, None], psf[None, None], window_strides=(1, 1),
            padding=[(49, 49), (49, 49)],
            precision=lax.Precision.HIGHEST)[0, 0]
        dmask = d > d.max() - 0.001
        hr = jnp.where(dmask, jnp.where(dmask, 0.0, hr).max(), hr)
        m = jnp.exp(-lr_sdf ** 2 / g)
        m = (m - m.min()) / (m.max() - m.min())
        lr = jnp.sum(m * hr[None, None], axis=(-2, -1)) * 1e-4
        psfs.append(psf); hrs.append(hr); lrs.append(lr)
    return jnp.stack(hrs), jnp.stack(lrs), jnp.stack(psfs)


if __name__ == "__main__":
    key = jax.random.PRNGKey(0)
    k_x, k_d, k_p = jax.random.split(key, 3)
    B = 2
    # x: LR tactile (B, C=3, 4, 4) -> flatten to 16*3 = 48 MLP features
    x = jax.random.normal(k_x, (B, 3, 4, 4), dtype=jnp.float32)
    # depth: (B, 1, 100, 100) high-res depth (module is hard-wired to 100x100)
    depth = jax.random.uniform(k_d, (B, 1, 100, 100), dtype=jnp.float32)
    params = init_mlp_params(k_p)

    fwd = jax.jit(lambda xx, dd: tpsf_forward(xx, dd, params))
    hr, lr, psf, ab = fwd(x, depth)
    jax.block_until_ready((hr, lr, psf, ab))

    assert hr.shape == (B, 1, 100, 100)
    assert lr.shape == (B, 1, 4, 4)
    assert psf.shape == (B, 1, 99, 99)
    assert ab.shape == (B, 1, 3)
    assert bool(jnp.all(jnp.isfinite(hr)))
    assert bool(jnp.all(jnp.isfinite(lr)))
    assert bool(jnp.all(jnp.isfinite(psf)))
    assert bool(jnp.all(ab > 0.0))            # Softplus output must be positive

    # Validate the separable-Gaussian / closed-form rewrite against the direct
    # f32 reference (tolerances cover MXU precision differences).
    r_hr, r_lr, r_psf = jax.jit(reference_heavy)(ab[:, 0], depth)
    jax.block_until_ready((r_hr, r_lr, r_psf))
    assert bool(jnp.allclose(psf[:, 0], r_psf, rtol=1e-2, atol=1e-2))
    assert bool(jnp.allclose(hr[:, 0], r_hr, rtol=1e-2, atol=1e-2))
    assert bool(jnp.allclose(lr[:, 0], r_lr, rtol=1e-2, atol=1e-2))

    print("KERNEL_OK")
</pallas_src>

<mosaic_0001>
module attributes {stable_mosaic.version = 11 : i64} {
  func.func @tpsf_main_kernel(%arg0: i32, %arg1: memref<2x3xf32, #tpu.memory_space<smem>>, %arg2: memref<1x128x128xf32, #tpu.memory_space<vmem>>, %arg3: memref<128x128xf32, #tpu.memory_space<vmem>>, %arg4: memref<4x128xf32, #tpu.memory_space<vmem>>, %arg5: memref<128x4xf32, #tpu.memory_space<vmem>>, %arg6: memref<128x1xf32, #tpu.memory_space<vmem>>, %arg7: memref<1x128xf32, #tpu.memory_space<vmem>>, %arg8: memref<1x128x128xf32, #tpu.memory_space<vmem>>, %arg9: memref<1x4x4xf32, #tpu.memory_space<vmem>>, %arg10: memref<1x128x128xf32, #tpu.memory_space<vmem>>) attributes {dimension_semantics = [#tpu.dimension_semantics<parallel>], iteration_bounds = array<i64: 2>, scalar_prefetch = 0 : i64, scratch_operands = 0 : i64, tpu.core_type = #tpu.core_type<tc>, window_params = [{transform_indices = @transform_0, window_bounds = array<i64: 2, 3>}, {transform_indices = @transform_1, window_bounds = array<i64: 1, 128, 128>}, {pipeline_mode = #tpu.pipeline_mode<synchronous>, transform_indices = @transform_2, window_bounds = array<i64: 128, 128>}, {pipeline_mode = #tpu.pipeline_mode<synchronous>, transform_indices = @transform_3, window_bounds = array<i64: 4, 128>}, {pipeline_mode = #tpu.pipeline_mode<synchronous>, transform_indices = @transform_4, window_bounds = array<i64: 128, 4>}, {pipeline_mode = #tpu.pipeline_mode<synchronous>, transform_indices = @transform_5, window_bounds = array<i64: 128, 1>}, {pipeline_mode = #tpu.pipeline_mode<synchronous>, transform_indices = @transform_6, window_bounds = array<i64: 1, 128>}, {transform_indices = @transform_7, window_bounds = array<i64: 1, 128, 128>}, {transform_indices = @transform_8, window_bounds = array<i64: 1, 4, 4>}, {transform_indices = @transform_9, window_bounds = array<i64: 1, 128, 128>}]} {
    %0 = arith.index_cast %arg0 : i32 to index
    %c0 = arith.constant 0 : index
    %1 = memref.load %arg1[%0, %c0] : memref<2x3xf32, #tpu.memory_space<smem>>
    %2 = arith.index_cast %arg0 : i32 to index
    %c1 = arith.constant 1 : index
    %3 = memref.load %arg1[%2, %c1] : memref<2x3xf32, #tpu.memory_space<smem>>
    %4 = arith.index_cast %arg0 : i32 to index
    %c2 = arith.constant 2 : index
    %5 = memref.load %arg1[%4, %c2] : memref<2x3xf32, #tpu.memory_space<smem>>
    %6 = arith.mulf %3, %3 : f32
    %cst = arith.constant -0.0208246559 : f32
    %7 = arith.divf %cst, %6 : f32
    %cst_0 = arith.constant -0.00660589244 : f32
    %8 = arith.divf %cst_0, %5 : f32
    %c0_1 = arith.constant 0 : index
    %c0_2 = arith.constant 0 : index
    %9 = vector.load %arg6[%c0_1, %c0_2] : memref<128x1xf32, #tpu.memory_space<vmem>>, vector<128x1xf32>
    %10 = vector.broadcast %7 : f32 to vector<128x1xf32>
    %11 = arith.mulf %10, %9 : vector<128x1xf32>
    %12 = math.exp %11 : vector<128x1xf32>
    %c0_3 = arith.constant 0 : index
    %c0_4 = arith.constant 0 : index
    %13 = vector.load %arg7[%c0_3, %c0_4] : memref<1x128xf32, #tpu.memory_space<vmem>>, vector<1x128xf32>
    %14 = vector.broadcast %7 : f32 to vector<1x128xf32>
    %15 = arith.mulf %14, %13 : vector<1x128xf32>
    %16 = math.exp %15 : vector<1x128xf32>
    %17 = vector.broadcast %1 : f32 to vector<128x1xf32>
    %18 = arith.mulf %17, %12 : vector<128x1xf32>
    %19 = vector.broadcast %18 : vector<128x1xf32> to vector<128x128xf32>
    %20 = vector.broadcast %16 : vector<1x128xf32> to vector<128x128xf32>
    %21 = arith.mulf %19, %20 : vector<128x128xf32>
    %c0_5 = arith.constant 0 : index
    %c0_6 = arith.constant 0 : index
    %c0_7 = arith.constant 0 : index
    %22 = vector.load %arg10[%c0_5, %c0_6, %c0_7] : memref<1x128x128xf32, #tpu.memory_space<vmem>>, vector<1x128x128xf32>
    %23 = vector.shape_cast %22 : vector<1x128x128xf32> to vector<128x128xf32>
    %24 = vector.shape_cast %21 : vector<128x128xf32> to vector<1x128x128xf32>
    tpu.vector_store %arg10[%c0_5, %c0_6, %c0_7], %24 {strides = array<i32>} : memref<1x128x128xf32, #tpu.memory_space<vmem>>, vector<1x128x128xf32>,
    %c0_8 = arith.constant 0 : index
    %c0_9 = arith.constant 0 : index
    %25 = vector.load %arg3[%c0_8, %c0_9] : memref<128x128xf32, #tpu.memory_space<vmem>>, vector<128x128xf32>
    %26 = vector.broadcast %7 : f32 to vector<128x128xf32>
    %27 = arith.mulf %26, %25 : vector<128x128xf32>
    %28 = math.exp %27 : vector<128x128xf32>
    %c0_10 = arith.constant 0 : index
    %c0_11 = arith.constant 0 : index
    %c0_12 = arith.constant 0 : index
    %29 = vector.load %arg2[%c0_10, %c0_11, %c0_12] : memref<1x128x128xf32, #tpu.memory_space<vmem>>, vector<1x128x128xf32>
    %30 = vector.shape_cast %29 : vector<1x128x128xf32> to vector<128x128xf32>
    %cst_13 = arith.constant dense<0.000000e+00> : vector<128x128xf32>
    %31 = tpu.matmul %30, %28, %cst_13 {dimension_numbers = #tpu.dot_dimension_numbers<[1], [0], [0], [1], [0, 0, 1, 1], [], []>} : vector<128x128xf32>, vector<128x128xf32>, vector<128x128xf32> -> vector<128x128xf32>
    %cst_14 = arith.constant dense<0.000000e+00> : vector<128x128xf32>
    %32 = tpu.matmul %28, %31, %cst_14 {dimension_numbers = #tpu.dot_dimension_numbers<[1], [0], [0], [1], [0, 0, 1, 1], [], []>} : vector<128x128xf32>, vector<128x128xf32>, vector<128x128xf32> -> vector<128x128xf32>
    %33 = vector.broadcast %1 : f32 to vector<128x128xf32>
    %34 = arith.mulf %33, %32 : vector<128x128xf32>
    %35 = vector.shape_cast %30 : vector<128x128xf32> to vector<1x128x128xf32>
    %cst_15 = arith.constant dense<0xFF800000> : vector<1xf32>
    %36 = vector.multi_reduction <maximumf>, %35, %cst_15 [1, 2] : vector<1x128x128xf32> to vector<1xf32>
    %37 = vector.shape_cast %36 : vector<1xf32> to vector<1x1x1xf32>
    %38 = vector.extract %37[0, 0, 0] : f32 from vector<1x1x1xf32>
    %cst_16 = arith.constant 1.000000e-03 : f32
    %39 = arith.subf %38, %cst_16 : f32
    %40 = vector.broadcast %39 : f32 to vector<128x128xf32>
    %41 = arith.cmpf ogt, %30, %40 : vector<128x128xf32>
    %cst_17 = arith.constant 0.000000e+00 : f32
    %42 = vector.broadcast %cst_17 : f32 to vector<128x128xf32>
    %43 = arith.select %41, %42, %34 : vector<128x128xi1>, vector<128x128xf32>
    %44 = vector.shape_cast %43 : vector<128x128xf32> to vector<1x128x128xf32>
    %cst_18 = arith.constant dense<0xFF800000> : vector<1xf32>
    %45 = vector.multi_reduction <maximumf>, %44, %cst_18 [1, 2] : vector<1x128x128xf32> to vector<1xf32>
    %46 = vector.shape_cast %45 : vector<1xf32> to vector<1x1x1xf32>
    %47 = vector.extract %46[0, 0, 0] : f32 from vector<1x1x1xf32>
    %48 = vector.broadcast %47 : f32 to vector<128x128xf32>
    %49 = arith.select %41, %48, %34 : vector<128x128xi1>, vector<128x128xf32>
    %c0_19 = arith.constant 0 : index
    %c0_20 = arith.constant 0 : index
    %c0_21 = arith.constant 0 : index
    %50 = vector.load %arg8[%c0_19, %c0_20, %c0_21] : memref<1x128x128xf32, #tpu.memory_space<vmem>>, vector<1x128x128xf32>
    %51 = vector.shape_cast %50 : vector<1x128x128xf32> to vector<128x128xf32>
    %52 = vector.shape_cast %49 : vector<128x128xf32> to vector<1x128x128xf32>
    tpu.vector_store %arg8[%c0_19, %c0_20, %c0_21], %52 {strides = array<i32>} : memref<1x128x128xf32, #tpu.memory_space<vmem>>, vector<1x128x128xf32>,
    %c0_22 = arith.constant 0 : index
    %c0_23 = arith.constant 0 : index
    %53 = vector.load %arg4[%c0_22, %c0_23] : memref<4x128xf32, #tpu.memory_space<vmem>>, vector<4x128xf32>
    %54 = vector.broadcast %8 : f32 to vector<4x128xf32>
    %55 = arith.mulf %54, %53 : vector<4x128xf32>
    %56 = math.exp %55 : vector<4x128xf32>
    %c0_24 = arith.constant 0 : index
    %c0_25 = arith.constant 0 : index
    %57 = vector.load %arg5[%c0_24, %c0_25] : memref<128x4xf32, #tpu.memory_space<vmem>>, vector<128x4xf32>
    %58 = vector.broadcast %8 : f32 to vector<128x4xf32>
    %59 = arith.mulf %58, %57 : vector<128x4xf32>
    %60 = math.exp %59 : vector<128x4xf32>
    %cst_26 = arith.constant dense<0.000000e+00> : vector<4x128xf32>
    %61 = tpu.matmul %56, %49, %cst_26 {dimension_numbers = #tpu.dot_dimension_numbers<[1], [0], [0], [1], [0, 0, 1, 1], [], []>} : vector<4x128xf32>, vector<128x128xf32>, vector<4x128xf32> -> vector<4x128xf32>
    %cst_27 = arith.constant dense<0.000000e+00> : vector<4x4xf32>
    %62 = tpu.matmul %61, %60, %cst_27 {dimension_numbers = #tpu.dot_dimension_numbers<[1], [0], [0], [1], [0, 0, 1, 1], [], []>} : vector<4x128xf32>, vector<128x4xf32>, vector<4x4xf32> -> vector<4x4xf32>
    %63 = vector.shape_cast %49 : vector<128x128xf32> to vector<1x128x128xf32>
    %cst_28 = arith.constant dense<0.000000e+00> : vector<1xf32>
    %64 = vector.multi_reduction <add>, %63, %cst_28 [1, 2] : vector<1x128x128xf32> to vector<1xf32>
    %65 = vector.shape_cast %64 : vector<1xf32> to vector<1x1x1xf32>
    %66 = vector.extract %65[0, 0, 0] : f32 from vector<1x1x1xf32>
    %cst_29 = arith.constant -1.000000e+02 : f32
    %67 = vector.broadcast %cst_29 : f32 to vector<1x1xf32>
    %68 = vector.broadcast %5 : f32 to vector<1x1xf32>
    %69 = arith.divf %67, %68 : vector<1x1xf32>
    %70 = math.exp %69 : vector<1x1xf32>
    %71 = vector.broadcast %66 : f32 to vector<1x1xf32>
    %72 = arith.mulf %70, %71 : vector<1x1xf32>
    %73 = vector.broadcast %72 : vector<1x1xf32> to vector<4x4xf32>
    %74 = arith.subf %62, %73 : vector<4x4xf32>
    %cst_30 = arith.constant 1.000000e+00 : f32
    %75 = vector.broadcast %cst_30 : f32 to vector<1x1xf32>
    %76 = arith.subf %75, %70 : vector<1x1xf32>
    %77 = vector.broadcast %76 : vector<1x1xf32> to vector<4x4xf32>
    %78 = arith.divf %74, %77 : vector<4x4xf32>
    %cst_31 = arith.constant 9.99999974E-5 : f32
    %79 = vector.broadcast %cst_31 : f32 to vector<4x4xf32>
    %80 = arith.mulf %78, %79 : vector<4x4xf32>
    %c0_32 = arith.constant 0 : index
    %c0_33 = arith.constant 0 : index
    %c0_34 = arith.constant 0 : index
    %81 = vector.load %arg9[%c0_32, %c0_33, %c0_34] : memref<1x4x4xf32, #tpu.memory_space<vmem>>, vector<1x4x4xf32>
    %82 = vector.shape_cast %81 : vector<1x4x4xf32> to vector<4x4xf32>
    %83 = vector.shape_cast %80 : vector<4x4xf32> to vector<1x4x4xf32>
    tpu.vector_store %arg9[%c0_32, %c0_33, %c0_34], %83 {strides = array<i32>} : memref<1x4x4xf32, #tpu.memory_space<vmem>>, vector<1x4x4xf32>,
    return
  }
  func.func @transform_0(%arg0: i32) -> (i32, i32) {
    %c0_i32 = arith.constant 0 : i32
    %c0_i32_0 = arith.constant 0 : i32
    %c0_i32_1 = arith.constant 0 : i32
    return %c0_i32, %c0_i32_0 : i32, i32
  }
  func.func @transform_1(%arg0: i32) -> (i32, i32, i32) {
    %c0_i32 = arith.constant 0 : i32
    %c0_i32_0 = arith.constant 0 : i32
    %c0_i32_1 = arith.constant 0 : i32
    return %arg0, %c0_i32, %c0_i32_0 : i32, i32, i32
  }
  func.func @transform_2(%arg0: i32) -> (i32, i32) {
    %c0_i32 = arith.constant 0 : i32
    %c0_i32_0 = arith.constant 0 : i32
    %c0_i32_1 = arith.constant 0 : i32
    return %c0_i32, %c0_i32_0 : i32, i32
  }
  func.func @transform_3(%arg0: i32) -> (i32, i32) {
    %c0_i32 = arith.constant 0 : i32
    %c0_i32_0 = arith.constant 0 : i32
    %c0_i32_1 = arith.constant 0 : i32
    return %c0_i32, %c0_i32_0 : i32, i32
  }
  func.func @transform_4(%arg0: i32) -> (i32, i32) {
    %c0_i32 = arith.constant 0 : i32
    %c0_i32_0 = arith.constant 0 : i32
    %c0_i32_1 = arith.constant 0 : i32
    return %c0_i32, %c0_i32_0 : i32, i32
  }
  func.func @transform_5(%arg0: i32) -> (i32, i32) {
    %c0_i32 = arith.constant 0 : i32
    %c0_i32_0 = arith.constant 0 : i32
    %c0_i32_1 = arith.constant 0 : i32
    return %c0_i32, %c0_i32_0 : i32, i32
  }
  func.func @transform_6(%arg0: i32) -> (i32, i32) {
    %c0_i32 = arith.constant 0 : i32
    %c0_i32_0 = arith.constant 0 : i32
    %c0_i32_1 = arith.constant 0 : i32
    return %c0_i32, %c0_i32_0 : i32, i32
  }
  func.func @transform_7(%arg0: i32) -> (i32, i32, i32) {
    %c0_i32 = arith.constant 0 : i32
    %c0_i32_0 = arith.constant 0 : i32
    %c0_i32_1 = arith.constant 0 : i32
    return %arg0, %c0_i32, %c0_i32_0 : i32, i32, i32
  }
  func.func @transform_8(%arg0: i32) -> (i32, i32, i32) {
    %c0_i32 = arith.constant 0 : i32
    %c0_i32_0 = arith.constant 0 : i32
    %c0_i32_1 = arith.constant 0 : i32
    return %arg0, %c0_i32, %c0_i32_0 : i32, i32, i32
  }
  func.func @transform_9(%arg0: i32) -> (i32, i32, i32) {
    %c0_i32 = arith.constant 0 : i32
    %c0_i32_0 = arith.constant 0 : i32
    %c0_i32_1 = arith.constant 0 : i32
    return %arg0, %c0_i32, %c0_i32_0 : i32, i32, i32
  }
}

</mosaic_0001>

<llo_original>
// kernel: _lambda_.1
$region0: #{_lambda_.1}
  #allocation0 [shape = 'u32[]', space=smem, size = 0x4, offset = 0x4, fixed_abs, tag = 'smem constant byte address 0x4 - core index']
  #allocation1 [shape = 'u32[144,128]{1,0:T(1,128)}', space=vmem, size = 0x12000, scoped, tag = 'internal scratch']
  %s0 = inlined_call_operand.vmem [shape: f32[2,3], index: 0, kind: input, shape index: {}]
  %s1 = inlined_call_operand.vmem [shape: f32[2,128,128], index: 1, kind: input, shape index: {}]
  %s2 = inlined_call_operand.vmem [shape: f32[128,128], index: 2, kind: input, shape index: {}]
  %s3 = inlined_call_operand.vmem [shape: f32[4,128], index: 3, kind: input, shape index: {}]
  %s4 = inlined_call_operand.vmem [shape: f32[128,4], index: 4, kind: input, shape index: {}]
  %s5 = inlined_call_operand.vmem [shape: f32[128,1], index: 5, kind: input, shape index: {}]
  %s6 = inlined_call_operand.vmem [shape: f32[1,128], index: 6, kind: input, shape index: {}]
  %s7 = inlined_call_operand.vmem [shape: f32[2,128,128], index: 7, kind: output, shape index: {0}]
  %s8 = inlined_call_operand.hbm [shape: f32[2,4,4], index: 8, kind: output, shape index: {1}]
  %s9 = inlined_call_operand.vmem [shape: f32[2,128,128], index: 9, kind: output, shape index: {2}]
  %10 = xla_tuple %s7, %s8, %s9
  %s11 = sld [smem:[#allocation0]]
  $region81: #{_lambda_.1} parent=0
    _
  %s13 = ssub.s32 1, %s11
  %s14 = scalar_select 0, %s13, %s11
  $region1: #{_lambda_.1} parent=0
    #allocation2 [shape = 'u8[1024]{0}', space=smem, size = 0x400, scoped, tag = 'input window, operand 0, single buffered']
    #allocation3 [shape = 's32[2]{0}', space=sflag, size = 0x8, scoped, tag = 'scoped memory for _lambda_.1']
    #allocation4 [shape = 's32[2]{0}', space=sflag, size = 0x8, scoped, tag = 'scoped memory for _lambda_.1']
    #allocation5 [shape = 'u8[4096]{0}', space=vmem, size = 0x1000, scoped, tag = 'output window, operand 1']
    %15 = vsyncpa [#allocation4], 0
    %16 = vsyncpa [#allocation3], 0
    %s17 = scalar_lea.sflag [#allocation3], 1
    %18 = vsyncpa %s17, 0
    loop: start=0, step=1, limit=4
    $region2: #{_lambda_.1} parent=1 // loop_pre_header
      _
    $region3: #{_lambda_.1} parent=1 // loop_header
      %s20 = sphi 0, %s24
      %p21 = scmp.ge.s32.totalorder %s20, 4
      %s28 = sphi 0, %s28
      %s30 = sphi 0, %s28
      %s31 = sphi 0, %s30
      %s45 = sphi 0, %s31
      %s51 = sphi 0, %s53
      %s54 = sphi 0, %s51
      %s55 = sphi 0, %s54
      %s71 = sphi 0, %s55
      %s75 = sphi 0, %s75
      %s77 = sphi 0, %s75
      %s78 = sphi 0, %s77
      %s92 = sphi 0, %s78
      %s96 = sphi 0, %s96
      %s98 = sphi 0, %s96
      %s99 = sphi 0, %s98
      %s113 = sphi 0, %s99
      %s117 = sphi 0, %s117
      %s119 = sphi 0, %s117
      %s120 = sphi 0, %s119
      %s134 = sphi 0, %s120
      %s138 = sphi 0, %s138
      %s140 = sphi 0, %s138
      %s141 = sphi 0, %s140
      %s155 = sphi 0, %s141
      %s159 = sphi 0, %s159
      %s161 = sphi 0, %s159
      %s162 = sphi 0, %s161
      %s176 = sphi 0, %s162
      %s182 = sphi 0, %s184
      %s185 = sphi 0, %s182
      %s186 = sphi 0, %s185
      %s202 = sphi 0, %s186
      %s208 = sphi 0, %s210
      %s211 = sphi 0, %s208
      %s212 = sphi 0, %s211
      %s228 = sphi 0, %s212
      %s234 = sphi 0, %s236
      %s237 = sphi 0, %s234
      %s238 = sphi 0, %s237
      %s254 = sphi 0, %s238
    $region4: #{_lambda_.1} parent=1 // loop_header_branch
      %23 = sbr.rel (%p21) target = $region8
    $region5: #{_lambda_.1} parent=1 // loop_body
      %s25 = ssub.s32 %s20, 1
      %s26 = ssub.s32 %s20, 2
      %s27 = sadd.s32 %s20, 1
      %s29 = sadd.s32 %s28, 1
      %p32 = scmp.eq.s32.totalorder %s20, 1
      %p33 = scmp.ne.s32.totalorder %s28, %s30
      %p34 = scmp.eq.s32.totalorder %s20, 0
      %p35 = por %p33, %p34
      %p36 = scmp.ne.s32.totalorder %s28, %s30
      %p37 = scmp.eq.s32.totalorder %s25, 1
      %p38 = por %p36, %p37
      %p39 = scmp.ne.s32.totalorder %s30, %s31
      %p40 = scmp.eq.s32.totalorder %s25, 0
      %p41 = por %p39, %p40
      %p42 = scmp.ne.s32.totalorder %s30, %s31
      %p43 = scmp.eq.s32.totalorder %s26, 1
      %p44 = por %p42, %p43
      %p46 = scmp.ne.s32.totalorder %s31, %s45
      %p47 = scmp.eq.s32.totalorder %s26, 0
      %p48 = por %p46, %p47
      %s49 = ssub.s32 %s20, %s27
      %p50 = scmp.eq.s32.totalorder %s49, 0
      %s52 = sadd.s32 %s51, 1
      %s53 = scalar_select %p50, %s51, %s52
      %p56 = pneg %p50
      %p57 = scmp.eq.s32.totalorder %s20, 1
      %p58 = por %p56, %p57
      %p59 = scmp.ne.s32.totalorder %s51, %s54
      %p60 = scmp.eq.s32.totalorder %s20, 0
      %p61 = por %p59, %p60
      %p62 = scmp.ne.s32.totalorder %s51, %s54
      %p63 = scmp.eq.s32.totalorder %s25, 1
      %p64 = por %p62, %p63
      %p65 = scmp.ne.s32.totalorder %s54, %s55
      %p66 = scmp.eq.s32.totalorder %s25, 0
      %p67 = por %p65, %p66
      %p68 = scmp.ne.s32.totalorder %s54, %s55
      %p69 = scmp.eq.s32.totalorder %s26, 1
      %p70 = por %p68, %p69
      %p72 = scmp.ne.s32.totalorder %s55, %s71
      %p73 = scmp.eq.s32.totalorder %s26, 0
      %p74 = por %p72, %p73
      %s76 = sadd.s32 %s75, 1
      %p79 = scmp.eq.s32.totalorder %s20, 1
      %p80 = scmp.ne.s32.totalorder %s75, %s77
      %p81 = scmp.eq.s32.totalorder %s20, 0
      %p82 = por %p80, %p81
      %p83 = scmp.ne.s32.totalorder %s75, %s77
      %p84 = scmp.eq.s32.totalorder %s25, 1
      %p85 = por %p83, %p84
      %p86 = scmp.ne.s32.totalorder %s77, %s78
      %p87 = scmp.eq.s32.totalorder %s25, 0
      %p88 = por %p86, %p87
      %p89 = scmp.ne.s32.totalorder %s77, %s78
      %p90 = scmp.eq.s32.totalorder %s26, 1
      %p91 = por %p89, %p90
      %p93 = scmp.ne.s32.totalorder %s78, %s92
      %p94 = scmp.eq.s32.totalorder %s26, 0
      %p95 = por %p93, %p94
      %s97 = sadd.s32 %s96, 1
      %p100 = scmp.eq.s32.totalorder %s20, 1
      %p101 = scmp.ne.s32.totalorder %s96, %s98
      %p102 = scmp.eq.s32.totalorder %s20, 0
      %p103 = por %p101, %p102
      %p104 = scmp.ne.s32.totalorder %s96, %s98
      %p105 = scmp.eq.s32.totalorder %s25, 1
      %p106 = por %p104, %p105
      %p107 = scmp.ne.s32.totalorder %s98, %s99
      %p108 = scmp.eq.s32.totalorder %s25, 0
      %p109 = por %p107, %p108
      %p110 = scmp.ne.s32.totalorder %s98, %s99
      %p111 = scmp.eq.s32.totalorder %s26, 1
      %p112 = por %p110, %p111
      %p114 = scmp.ne.s32.totalorder %s99, %s113
      %p115 = scmp.eq.s32.totalorder %s26, 0
      %p116 = por %p114, %p115
      %s118 = sadd.s32 %s117, 1
      %p121 = scmp.eq.s32.totalorder %s20, 1
      %p122 = scmp.ne.s32.totalorder %s117, %s119
      %p123 = scmp.eq.s32.totalorder %s20, 0
      %p124 = por %p122, %p123
      %p125 = scmp.ne.s32.totalorder %s117, %s119
      %p126 = scmp.eq.s32.totalorder %s25, 1
      %p127 = por %p125, %p126
      %p128 = scmp.ne.s32.totalorder %s119, %s120
      %p129 = scmp.eq.s32.totalorder %s25, 0
      %p130 = por %p128, %p129
      %p131 = scmp.ne.s32.totalorder %s119, %s120
      %p132 = scmp.eq.s32.totalorder %s26, 1
      %p133 = por %p131, %p132
      %p135 = scmp.ne.s32.totalorder %s120, %s134
      %p136 = scmp.eq.s32.totalorder %s26, 0
      %p137 = por %p135, %p136
      %s139 = sadd.s32 %s138, 1
      %p142 = scmp.eq.s32.totalorder %s20, 1
      %p143 = scmp.ne.s32.totalorder %s138, %s140
      %p144 = scmp.eq.s32.totalorder %s20, 0
      %p145 = por %p143, %p144
      %p146 = scmp.ne.s32.totalorder %s138, %s140
      %p147 = scmp.eq.s32.totalorder %s25, 1
      %p148 = por %p146, %p147
      %p149 = scmp.ne.s32.totalorder %s140, %s141
      %p150 = scmp.eq.s32.totalorder %s25, 0
      %p151 = por %p149, %p150
      %p152 = scmp.ne.s32.totalorder %s140, %s141
      %p153 = scmp.eq.s32.totalorder %s26, 1
      %p154 = por %p152, %p153
      %p156 = scmp.ne.s32.totalorder %s141, %s155
      %p157 = scmp.eq.s32.totalorder %s26, 0
      %p158 = por %p156, %p157
      %s160 = sadd.s32 %s159, 1
      %p163 = scmp.eq.s32.totalorder %s20, 1
      %p164 = scmp.ne.s32.totalorder %s159, %s161
      %p165 = scmp.eq.s32.totalorder %s20, 0
      %p166 = por %p164, %p165
      %p167 = scmp.ne.s32.totalorder %s159, %s161
      %p168 = scmp.eq.s32.totalorder %s25, 1
      %p169 = por %p167, %p168
      %p170 = scmp.ne.s32.totalorder %s161, %s162
      %p171 = scmp.eq.s32.totalorder %s25, 0
      %p172 = por %p170, %p171
      %p173 = scmp.ne.s32.totalorder %s161, %s162
      %p174 = scmp.eq.s32.totalorder %s26, 1
      %p175 = por %p173, %p174
      %p177 = scmp.ne.s32.totalorder %s162, %s176
      %p178 = scmp.eq.s32.totalorder %s26, 0
      %p179 = por %p177, %p178
      %s180 = ssub.s32 %s20, %s27
      %p181 = scmp.eq.s32.totalorder %s180, 0
      %s183 = sadd.s32 %s182, 1
      %s184 = scalar_select %p181, %s182, %s183
      %p187 = pneg %p181
      %p188 = scmp.eq.s32.totalorder %s20, 1
      %p189 = por %p187, %p188
      %p190 = scmp.ne.s32.totalorder %s182, %s185
      %p191 = scmp.eq.s32.totalorder %s20, 0
      %p192 = por %p190, %p191
      %p193 = scmp.ne.s32.totalorder %s182, %s185
      %p194 = scmp.eq.s32.totalorder %s25, 1
      %p195 = por %p193, %p194
      %p196 = scmp.ne.s32.totalorder %s185, %s186
      %p197 = scmp.eq.s32.totalorder %s25, 0
      %p198 = por %p196, %p197
      %p199 = scmp.ne.s32.totalorder %s185, %s186
      %p200 = scmp.eq.s32.totalorder %s26, 1
      %p201 = por %p199, %p200
      %p203 = scmp.ne.s32.totalorder %s186, %s202
      %p204 = scmp.eq.s32.totalorder %s26, 0
      %p205 = por %p203, %p204
      %s206 = ssub.s32 %s20, %s27
      %p207 = scmp.eq.s32.totalorder %s206, 0
      %s209 = sadd.s32 %s208, 1
      %s210 = scalar_select %p207, %s208, %s209
      %p213 = pneg %p207
      %p214 = scmp.eq.s32.totalorder %s20, 1
      %p215 = por %p213, %p214
      %p216 = scmp.ne.s32.totalorder %s208, %s211
      %p217 = scmp.eq.s32.totalorder %s20, 0
      %p218 = por %p216, %p217
      %p219 = scmp.ne.s32.totalorder %s208, %s211
      %p220 = scmp.eq.s32.totalorder %s25, 1
      %p221 = por %p219, %p220
      %p222 = scmp.ne.s32.totalorder %s211, %s212
      %p223 = scmp.eq.s32.totalorder %s25, 0
      %p224 = por %p222, %p223
      %p225 = scmp.ne.s32.totalorder %s211, %s212
      %p226 = scmp.eq.s32.totalorder %s26, 1
      %p227 = por %p225, %p226
      %p229 = scmp.ne.s32.totalorder %s212, %s228
      %p230 = scmp.eq.s32.totalorder %s26, 0
      %p231 = por %p229, %p230
      %s232 = ssub.s32 %s20, %s27
      %p233 = scmp.eq.s32.totalorder %s232, 0
      %s235 = sadd.s32 %s234, 1
      %s236 = scalar_select %p233, %s234, %s235
      %p239 = pneg %p233
      %p240 = scmp.eq.s32.totalorder %s20, 1
      %p241 = por %p239, %p240
      %p242 = scmp.ne.s32.totalorder %s234, %s237
      %p243 = scmp.eq.s32.totalorder %s20, 0
      %p244 = por %p242, %p243
      %p245 = scmp.ne.s32.totalorder %s234, %s237
      %p246 = scmp.eq.s32.totalorder %s25, 1
      %p247 = por %p245, %p246
      %p248 = scmp.ne.s32.totalorder %s237, %s238
      %p249 = scmp.eq.s32.totalorder %s25, 0
      %p250 = por %p248, %p249
      %p251 = scmp.ne.s32.totalorder %s237, %s238
      %p252 = scmp.eq.s32.totalorder %s26, 1
      %p253 = por %p251, %p252
      %p255 = scmp.ne.s32.totalorder %s238, %s254
      %p256 = scmp.eq.s32.totalorder %s26, 0
      %p257 = por %p255, %p256
      %p258 = scmp.le.s32.totalorder 1, %s20
      %p259 = scmp.lt.s32.totalorder %s20, 3
      %p260 = pnand %p258, %p259
      %p261 = pneg %p260
      // Predicated region
      $region9: #{_lambda_.1} parent=5 // pred_check
        _
      $region10: #{_lambda_.1} parent=5 // pred_check_branch
        %263 = sbr.rel (%p260) target = $region12
      $region11: #{_lambda_.1} parent=5 // pred_region
        %s264 = ssub.s32 %s20, 1
        // Predicated region
        $region13: #{_lambda_.1} parent=11 // pred_check
          %p265 = pneg %p41
        $region14: #{_lambda_.1} parent=11 // pred_check_branch
          %267 = sbr.rel (%p265) target = $region16
        $region15: #{_lambda_.1} parent=11 // pred_region
          %s269 = ssub.s32 32, 32
          %270 = vsyncadd [#allocation4], %s269
          %s272 = sshll.u32 %s0, 4
          %s273 = int_to_ptr.vmem [resolvable:$true] %s272
          %275 = dma.vmem_to_smem %s273, 32, [#allocation2], [#allocation4]
        $region16: #{_lambda_.1} parent=11 // pred_fallthru
          _
        // Predicated region
        $region17: #{_lambda_.1} parent=11 // pred_check
          %p276 = pneg %p88
        $region18: #{_lambda_.1} parent=11 // pred_check_branch
          %278 = sbr.rel (%p276) target = $region20
        $region19: #{_lambda_.1} parent=11 // pred_region
          _
        $region20: #{_lambda_.1} parent=11 // pred_fallthru
          _
        // Predicated region
        $region21: #{_lambda_.1} parent=11 // pred_check
          %p279 = pneg %p109
        $region22: #{_lambda_.1} parent=11 // pred_check_branch
          %281 = sbr.rel (%p279) target = $region24
        $region23: #{_lambda_.1} parent=11 // pred_region
          _
        $region24: #{_lambda_.1} parent=11 // pred_fallthru
          _
        // Predicated region
        $region25: #{_lambda_.1} parent=11 // pred_check
          %p282 = pneg %p130
        $region26: #{_lambda_.1} parent=11 // pred_check_branch
          %284 = sbr.rel (%p282) target = $region28
        $region27: #{_lambda_.1} parent=11 // pred_region
          _
        $region28: #{_lambda_.1} parent=11 // pred_fallthru
          _
        // Predicated region
        $region29: #{_lambda_.1} parent=11 // pred_check
          %p285 = pneg %p151
        $region30: #{_lambda_.1} parent=11 // pred_check_branch
          %287 = sbr.rel (%p285) target = $region32
        $region31: #{_lambda_.1} parent=11 // pred_region
          _
        $region32: #{_lambda_.1} parent=11 // pred_fallthru
          _
        // Predicated region
        $region33: #{_lambda_.1} parent=11 // pred_check
          %p288 = pneg %p172
        $region34: #{_lambda_.1} parent=11 // pred_check_branch
          %290 = sbr.rel (%p288) target = $region36
        $region35: #{_lambda_.1} parent=11 // pred_region
          _
        $region36: #{_lambda_.1} parent=11 // pred_fallthru
          _
      $region12: #{_lambda_.1} parent=5 // pred_fallthru
        _
      %p291 = scmp.lt.s32.totalorder %s20, 2
      // Predicated region
      $region37: #{_lambda_.1} parent=5 // pred_check
        %p292 = pneg %p291
      $region38: #{_lambda_.1} parent=5 // pred_check_branch
        %294 = sbr.rel (%p292) target = $region40
      $region39: #{_lambda_.1} parent=5 // pred_region
        // Predicated region
        $region41: #{_lambda_.1} parent=39 // pred_check
          %p295 = pneg %p61
        $region42: #{_lambda_.1} parent=39 // pred_check_branch
          %297 = sbr.rel (%p295) target = $region44
        $region43: #{_lambda_.1} parent=39 // pred_region
          %p298 = scmp.lt.s32.totalorder %s20, 1
          %s299 = scalar_select %p298, %s20, 1
          %s300 = smul.addr %s299, 16
          %s301 = smul.addr %s300, 8
          %s302 = scalar_lea.vmem %s1, %s301
        $region44: #{_lambda_.1} parent=39 // pred_fallthru
          _
      $region40: #{_lambda_.1} parent=5 // pred_fallthru
        _
      %p303 = scmp.le.s32.totalorder 1, %s20
      %p304 = scmp.lt.s32.totalorder %s20, 3
      %p305 = pnand %p303, %p304
      %p306 = pneg %p305
      // Predicated region
      $region45: #{_lambda_.1} parent=5 // pred_check
        _
      $region46: #{_lambda_.1} parent=5 // pred_check_branch
        %308 = sbr.rel (%p305) target = $region48
      $region47: #{_lambda_.1} parent=5 // pred_region
        %s309 = ssub.s32 %s20, 1
        // Predicated region
        $region49: #{_lambda_.1} parent=47 // pred_check
          %p310 = pneg %p41
        $region50: #{_lambda_.1} parent=47 // pred_check_branch
          %312 = sbr.rel (%p310) target = $region52
        $region51: #{_lambda_.1} parent=47 // pred_region
          %313 = dma.done [#allocation4], 32
        $region52: #{_lambda_.1} parent=47 // pred_fallthru
          _
        %314 = sfence
        %p315 = pneg %p41
        %p316 = pneg %p38
        %p317 = scmp.lt.s32.totalorder %s25, 1
        %s318 = scalar_select %p317, %s25, 1
        %s319 = smul.addr %s318, 16
        %s320 = smul.addr %s319, 8
        %s321 = scalar_lea.vmem %s1, %s320
        %p322 = pneg %p67
        %p323 = pneg %p64
        %p324 = pneg %p88
        %p325 = pneg %p85
        %p326 = pneg %p109
        %p327 = pneg %p106
        %p328 = pneg %p130
        %p329 = pneg %p127
        %p330 = pneg %p151
        %p331 = pneg %p148
        %p332 = pneg %p172
        %p333 = pneg %p169
        %p334 = pneg %p198
        %p335 = pneg %p195
        %p336 = scmp.lt.s32.totalorder %s25, 1
        %s337 = scalar_select %p336, %s25, 1
        %s338 = smul.addr %s337, 16
        %s339 = smul.addr %s338, 8
        %s340 = scalar_lea.vmem %s7, %s339
        %p341 = pneg %p224
        %p342 = pneg %p221
        %s343 = sand.u32 %s211, 1
        %s344 = scalar_lea.sflag [#allocation3], %s343
        %s345 = sand.u32 %s211, 1
        %s346 = smul.addr %s345, 4
        %s347 = scalar_lea.vmem [#allocation5], %s346
        %p348 = pneg %p250
        %p349 = pneg %p247
        %p350 = scmp.lt.s32.totalorder %s25, 1
        %s351 = scalar_select %p350, %s25, 1
        %s352 = smul.addr %s351, 16
        %s353 = smul.addr %s352, 8
        %s354 = scalar_lea.vmem %s9, %s353
        %p355 = scmp.lt.s32.totalorder %s25, 1
        %s356 = scalar_select %p355, %s25, 1
        %s357 = smul.addr %s356, 16
        %s358 = smul.addr %s357, 8
        %s359 = scalar_lea.vmem %s1, %s358
        %p360 = scmp.lt.s32.totalorder %s25, 1
        %s361 = scalar_select %p360, %s25, 1
        %s362 = smul.addr %s361, 16
        %s363 = smul.addr %s362, 8
        %s364 = scalar_lea.vmem %s7, %s363
        %p365 = scmp.lt.s32.totalorder %s25, 1
        %s366 = scalar_select %p365, %s25, 1
        %s367 = smul.addr %s366, 16
        %s368 = smul.addr %s367, 8
        %s369 = scalar_lea.vmem %s9, %s368
        %s370 = smul.u32 %s25, 128
        %s371 = sld [smem:[#allocation2 + %s370]]
        %s372 = sadd.s32 %s370, 1
        %s373 = sld [smem:[#allocation2 + %s372]]
        %s374 = sadd.s32 %s370, 2
        %s375 = sld [smem:[#allocation2 + %s374]]
        %s376 = smul.f32 %s373, %s373
        %v377 = vstv %s376
        %v378 = vrcp.pop %v377
        %s379 = vtos %v378
        %s380 = smul.f32 -0.020824656, %s379
        %v381 = vstv %s375
        %v382 = vrcp.pop %v381
        %s383 = vtos %v382
        %s384 = smul.f32 -0.0066058924, %s383
        %v385 = vld [vmem:[%s5] sm:$0xff]
        %v386 = vld [vmem:[%s5 + $0x8] sm:$0xff]
        %v387 = vld [vmem:[%s5 + $0x10] sm:$0xff]
        %v388 = vld [vmem:[%s5 + $0x18] sm:$0xff]
        %v389 = vld [vmem:[%s5 + $0x20] sm:$0xff]
        %v390 = vld [vmem:[%s5 + $0x28] sm:$0xff]
        %v391 = vld [vmem:[%s5 + $0x30] sm:$0xff]
        %v392 = vld [vmem:[%s5 + $0x38] sm:$0xff]
        %v393 = vld [vmem:[%s5 + $0x40] sm:$0xff]
        %v394 = vld [vmem:[%s5 + $0x48] sm:$0xff]
        %v395 = vld [vmem:[%s5 + $0x50] sm:$0xff]
        %v396 = vld [vmem:[%s5 + $0x58] sm:$0xff]
        %v397 = vld [vmem:[%s5 + $0x60] sm:$0xff]
        %v398 = vld [vmem:[%s5 + $0x68] sm:$0xff]
        %v399 = vld [vmem:[%s5 + $0x70] sm:$0xff]
        %v400 = vld [vmem:[%s5 + $0x78] sm:$0xff]
        %v401 = vstv %s380
        %v402 = vmul.f32 %v401, %v385
        %v403 = vmul.f32 %v401, %v386
        %v404 = vmul.f32 %v401, %v387
        %v405 = vmul.f32 %v401, %v388
        %v406 = vmul.f32 %v401, %v389
        %v407 = vmul.f32 %v401, %v390
        %v408 = vmul.f32 %v401, %v391
        %v409 = vmul.f32 %v401, %v392
        %v410 = vmul.f32 %v401, %v393
        %v411 = vmul.f32 %v401, %v394
        %v412 = vmul.f32 %v401, %v395
        %v413 = vmul.f32 %v401, %v396
        %v414 = vmul.f32 %v401, %v397
        %v415 = vmul.f32 %v401, %v398
        %v416 = vmul.f32 %v401, %v399
        %v417 = vmul.f32 %v401, %v400
        %v418 = vmul.f32 %v402, 1.442695
        %v419 = vpow.pop %v418
        %v420 = vmul.f32 %v403, 1.442695
        %v421 = vpow.pop %v420
        %v422 = vmul.f32 %v404, 1.442695
        %v423 = vpow.pop %v422
        %v424 = vmul.f32 %v405, 1.442695
        %v425 = vpow.pop %v424
        %v426 = vmul.f32 %v406, 1.442695
        %v427 = vpow.pop %v426
        %v428 = vmul.f32 %v407, 1.442695
        %v429 = vpow.pop %v428
        %v430 = vmul.f32 %v408, 1.442695
        %v431 = vpow.pop %v430
        %v432 = vmul.f32 %v409, 1.442695
        %v433 = vpow.pop %v432
        %v434 = vmul.f32 %v410, 1.442695
        %v435 = vpow.pop %v434
        %v436 = vmul.f32 %v411, 1.442695
        %v437 = vpow.pop %v436
        %v438 = vmul.f32 %v412, 1.442695
        %v439 = vpow.pop %v438
        %v440 = vmul.f32 %v413, 1.442695
        %v441 = vpow.pop %v440
        %v442 = vmul.f32 %v414, 1.442695
        %v443 = vpow.pop %v442
        %v444 = vmul.f32 %v415, 1.442695
        %v445 = vpow.pop %v444
        %v446 = vmul.f32 %v416, 1.442695
        %v447 = vpow.pop %v446
        %v448 = vmul.f32 %v417, 1.442695
        %v449 = vpow.pop %v448
        %v450 = vld [vmem:[%s6] sm:$0x1]
        %v451 = vmul.f32 %v401, %v450
        %v452 = vmul.f32 %v451, 1.442695
        %v453 = vpow.pop %v452
        %v454 = vstv %s371
        %v455 = vmul.f32 %v454, %v419
        %v456 = vmul.f32 %v454, %v421
        %v457 = vmul.f32 %v454, %v423
        %v458 = vmul.f32 %v454, %v425
        %v459 = vmul.f32 %v454, %v427
        %v460 = vmul.f32 %v454, %v429
        %v461 = vmul.f32 %v454, %v431
        %v462 = vmul.f32 %v454, %v433
        %v463 = vmul.f32 %v454, %v435
        %v464 = vmul.f32 %v454, %v437
        %v465 = vmul.f32 %v454, %v439
        %v466 = vmul.f32 %v454, %v441
        %v467 = vmul.f32 %v454, %v443
        %v468 = vmul.f32 %v454, %v445
        %v469 = vmul.f32 %v454, %v447
        %v470 = vmul.f32 %v454, %v449
        %472 = vset.pattern.permute.xlu0 0
        %473 = vperm.xlu0 %472, %v455
        %v474 = vpop.permute.xlu0 %473
        %477 = vset.pattern.permute.xlu0 0
        %478 = vperm.xlu0 %477, %v456
        %v479 = vpop.permute.xlu0 %478
        %482 = vset.pattern.permute.xlu0 0
        %483 = vperm.xlu0 %482, %v457
        %v484 = vpop.permute.xlu0 %483
        %487 = vset.pattern.permute.xlu0 0
        %488 = vperm.xlu0 %487, %v458
        %v489 = vpop.permute.xlu0 %488
        %492 = vset.pattern.permute.xlu0 0
        %493 = vperm.xlu0 %492, %v459
        %v494 = vpop.permute.xlu0 %493
        %497 = vset.pattern.permute.xlu0 0
        %498 = vperm.xlu0 %497, %v460
        %v499 = vpop.permute.xlu0 %498
        %502 = vset.pattern.permute.xlu0 0
        %503 = vperm.xlu0 %502, %v461
        %v504 = vpop.permute.xlu0 %503
        %507 = vset.pattern.permute.xlu0 0
        %508 = vperm.xlu0 %507, %v462
        %v509 = vpop.permute.xlu0 %508
        %512 = vset.pattern.permute.xlu0 0
        %513 = vperm.xlu0 %512, %v463
        %v514 = vpop.permute.xlu0 %513
        %517 = vset.pattern.permute.xlu0 0
        %518 = vperm.xlu0 %517, %v464
        %v519 = vpop.permute.xlu0 %518
        %522 = vset.pattern.permute.xlu0 0
        %523 = vperm.xlu0 %522, %v465
        %v524 = vpop.permute.xlu0 %523
        %527 = vset.pattern.permute.xlu0 0
        %528 = vperm.xlu0 %527, %v466
        %v529 = vpop.permute.xlu0 %528
        %532 = vset.pattern.permute.xlu0 0
        %533 = vperm.xlu0 %532, %v467
        %v534 = vpop.permute.xlu0 %533
        %537 = vset.pattern.permute.xlu0 0
        %538 = vperm.xlu0 %537, %v468
        %v539 = vpop.permute.xlu0 %538
        %542 = vset.pattern.permute.xlu0 0
        %543 = vperm.xlu0 %542, %v469
        %v544 = vpop.permute.xlu0 %543
        %547 = vset.pattern.permute.xlu0 0
        %548 = vperm.xlu0 %547, %v470
        %v549 = vpop.permute.xlu0 %548
        %v552 = vlaneseq
        %v553 = vshrl.u32 %v552, 7
        %v554 = vsub.s32 0, %v553
        %v555 = vrot.slane %v453, %v554
        %v557 = vmul.f32 %v474, %v555
        %v558 = vmul.f32 %v479, %v555
        %v559 = vmul.f32 %v484, %v555
        %v560 = vmul.f32 %v489, %v555
        %v561 = vmul.f32 %v494, %v555
        %v562 = vmul.f32 %v499, %v555
        %v563 = vmul.f32 %v504, %v555
        %v564 = vmul.f32 %v509, %v555
        %v565 = vmul.f32 %v514, %v555
        %v566 = vmul.f32 %v519, %v555
        %v567 = vmul.f32 %v524, %v555
        %v568 = vmul.f32 %v529, %v555
        %v569 = vmul.f32 %v534, %v555
        %v570 = vmul.f32 %v539, %v555
        %v571 = vmul.f32 %v544, %v555
        %v572 = vmul.f32 %v549, %v555
        %573 = vst [vmem:[%s369] sm:$0xff] %v557
        %574 = vst [vmem:[%s369 + $0x8] sm:$0xff] %v558
        %575 = vst [vmem:[%s369 + $0x10] sm:$0xff] %v559
        %576 = vst [vmem:[%s369 + $0x18] sm:$0xff] %v560
        %577 = vst [vmem:[%s369 + $0x20] sm:$0xff] %v561
        %578 = vst [vmem:[%s369 + $0x28] sm:$0xff] %v562
        %579 = vst [vmem:[%s369 + $0x30] sm:$0xff] %v563
        %580 = vst [vmem:[%s369 + $0x38] sm:$0xff] %v564
        %581 = vst [vmem:[%s369 + $0x40] sm:$0xff] %v565
        %582 = vst [vmem:[%s369 + $0x48] sm:$0xff] %v566
        %583 = vst [vmem:[%s369 + $0x50] sm:$0xff] %v567
        %584 = vst [vmem:[%s369 + $0x58] sm:$0xff] %v568
        %585 = vst [vmem:[%s369 + $0x60] sm:$0xff] %v569
        %586 = vst [vmem:[%s369 + $0x68] sm:$0xff] %v570
        %587 = vst [vmem:[%s369 + $0x70] sm:$0xff] %v571
        %588 = vst [vmem:[%s369 + $0x78] sm:$0xff] %v572
        %v589 = vld [vmem:[%s2] sm:$0xff]
        %v590 = vld [vmem:[%s2 + $0x8] sm:$0xff]
        %v591 = vld [vmem:[%s2 + $0x10] sm:$0xff]
        %v592 = vld [vmem:[%s2 + $0x18] sm:$0xff]
        %v593 = vld [vmem:[%s2 + $0x20] sm:$0xff]
        %v594 = vld [vmem:[%s2 + $0x28] sm:$0xff]
        %v595 = vld [vmem:[%s2 + $0x30] sm:$0xff]
        %v596 = vld [vmem:[%s2 + $0x38] sm:$0xff]
        %v597 = vld [vmem:[%s2 + $0x40] sm:$0xff]
        %v598 = vld [vmem:[%s2 + $0x48] sm:$0xff]
        %v599 = vld [vmem:[%s2 + $0x50] sm:$0xff]
        %v600 = vld [vmem:[%s2 + $0x58] sm:$0xff]
        %v601 = vld [vmem:[%s2 + $0x60] sm:$0xff]
        %v602 = vld [vmem:[%s2 + $0x68] sm:$0xff]
        %v603 = vld [vmem:[%s2 + $0x70] sm:$0xff]
        %v604 = vld [vmem:[%s2 + $0x78] sm:$0xff]
        %v605 = vmul.f32 %v401, %v589
        %v606 = vmul.f32 %v401, %v590
        %v607 = vmul.f32 %v401, %v591
        %v608 = vmul.f32 %v401, %v592
        %v609 = vmul.f32 %v401, %v593
        %v610 = vmul.f32 %v401, %v594
        %v611 = vmul.f32 %v401, %v595
        %v612 = vmul.f32 %v401, %v596
        %v613 = vmul.f32 %v401, %v597
        %v614 = vmul.f32 %v401, %v598
        %v615 = vmul.f32 %v401, %v599
        %v616 = vmul.f32 %v401, %v600
        %v617 = vmul.f32 %v401, %v601
        %v618 = vmul.f32 %v401, %v602
        %v619 = vmul.f32 %v401, %v603
        %v620 = vmul.f32 %v401, %v604
        %v621 = vmul.f32 %v605, 1.442695
        %v622 = vpow.pop %v621
        %v623 = vmul.f32 %v606, 1.442695
        %v624 = vpow.pop %v623
        %v625 = vmul.f32 %v607, 1.442695
        %v626 = vpow.pop %v625
        %v627 = vmul.f32 %v608, 1.442695
        %v628 = vpow.pop %v627
        %v629 = vmul.f32 %v609, 1.442695
        %v630 = vpow.pop %v629
        %v631 = vmul.f32 %v610, 1.442695
        %v632 = vpow.pop %v631
        %v633 = vmul.f32 %v611, 1.442695
        %v634 = vpow.pop %v633
        %v635 = vmul.f32 %v612, 1.442695
        %v636 = vpow.pop %v635
        %v637 = vmul.f32 %v613, 1.442695
        %v638 = vpow.pop %v637
        %v639 = vmul.f32 %v614, 1.442695
        %v640 = vpow.pop %v639
        %v641 = vmul.f32 %v615, 1.442695
        %v642 = vpow.pop %v641
        %v643 = vmul.f32 %v616, 1.442695
        %v644 = vpow.pop %v643
        %v645 = vmul.f32 %v617, 1.442695
        %v646 = vpow.pop %v645
        %v647 = vmul.f32 %v618, 1.442695
        %v648 = vpow.pop %v647
        %v649 = vmul.f32 %v619, 1.442695
        %v650 = vpow.pop %v649
        %v651 = vmul.f32 %v620, 1.442695
        %v652 = vpow.pop %v651
        %v653 = vld [vmem:[%s359] sm:$0xff]
        %v654 = vld [vmem:[%s359 + $0x8] sm:$0xff]
        %v655 = vld [vmem:[%s359 + $0x10] sm:$0xff]
        %v656 = vld [vmem:[%s359 + $0x18] sm:$0xff]
        %v657 = vld [vmem:[%s359 + $0x20] sm:$0xff]
        %v658 = vld [vmem:[%s359 + $0x28] sm:$0xff]
        %v659 = vld [vmem:[%s359 + $0x30] sm:$0xff]
        %v660 = vld [vmem:[%s359 + $0x38] sm:$0xff]
        %v661 = vld [vmem:[%s359 + $0x40] sm:$0xff]
        %v662 = vld [vmem:[%s359 + $0x48] sm:$0xff]
        %v663 = vld [vmem:[%s359 + $0x50] sm:$0xff]
        %v664 = vld [vmem:[%s359 + $0x58] sm:$0xff]
        %v665 = vld [vmem:[%s359 + $0x60] sm:$0xff]
        %v666 = vld [vmem:[%s359 + $0x68] sm:$0xff]
        %v667 = vld [vmem:[%s359 + $0x70] sm:$0xff]
        %v668 = vld [vmem:[%s359 + $0x78] sm:$0xff]
        %669 = vmatprep.subr.mxu0 0.0
        %670 = vmatpush1.msra.mxu0 %v652
        %671 = vmatprep.subr.mxu0 0.0
        %672 = vmatpush1.msra.mxu0 %v650
        %673 = vmatprep.subr.mxu0 0.0
        %674 = vmatpush1.msra.mxu0 %v648
        %675 = vmatprep.subr.mxu0 0.0
        %676 = vmatpush1.msra.mxu0 %v646
        %677 = vmatprep.subr.mxu0 0.0
        %678 = vmatpush1.msra.mxu0 %v644
        %679 = vmatprep.subr.mxu0 0.0
        %680 = vmatpush1.msra.mxu0 %v642
        %681 = vmatprep.subr.mxu0 0.0
        %682 = vmatpush1.msra.mxu0 %v640
        %683 = vmatprep.subr.mxu0 0.0
        %684 = vmatpush1.msra.mxu0 %v638
        %685 = vmatprep.subr.mxu0 0.0
        %686 = vmatpush1.msra.mxu0 %v636
        %687 = vmatprep.subr.mxu0 0.0
        %688 = vmatpush1.msra.mxu0 %v634
        %689 = vmatprep.subr.mxu0 0.0
        %690 = vmatpush1.msra.mxu0 %v632
        %691 = vmatprep.subr.mxu0 0.0
        %692 = vmatpush1.msra.mxu0 %v630
        %693 = vmatprep.subr.mxu0 0.0
        %694 = vmatpush1.msra.mxu0 %v628
        %695 = vmatprep.subr.mxu0 0.0
        %696 = vmatpush1.msra.mxu0 %v626
        %697 = vmatprep.subr.mxu0 0.0
        %698 = vmatpush1.msra.mxu0 %v624
        %699 = vmatprep.subr.mxu0 0.0
        %700 = vmatpush1.msra.mxu0 %v622
        %701 = vmatprep.subr.mxu0 0.0
        %702 = vmatpush2.msra.mxu0 0.0
        %703 = vmatprep.subr.mxu0 0.0
        %704 = vmatpush2.msra.mxu0 0.0
        %705 = vmatprep.subr.mxu0 0.0
        %706 = vmatpush2.msra.mxu0 0.0
        %707 = vmatprep.subr.mxu0 0.0
        %708 = vmatpush2.msra.mxu0 0.0
        %709 = vmatprep.subr.mxu0 0.0
        %710 = vmatpush2.msra.mxu0 0.0
        %711 = vmatprep.subr.mxu0 0.0
        %712 = vmatpush2.msra.mxu0 0.0
        %713 = vmatprep.subr.mxu0 0.0
        %714 = vmatpush2.msra.mxu0 0.0
        %715 = vmatprep.subr.mxu0 0.0
        %716 = vmatpush2.msra.mxu0 0.0
        %717 = vmatprep.subr.mxu0 0.0
        %718 = vmatpush2.msra.mxu0 0.0
        %719 = vmatprep.subr.mxu0 0.0
        %720 = vmatpush2.msra.mxu0 0.0
        %721 = vmatprep.subr.mxu0 0.0
        %722 = vmatpush2.msra.mxu0 0.0
        %723 = vmatprep.subr.mxu0 0.0
        %724 = vmatpush2.msra.mxu0 0.0
        %725 = vmatprep.subr.mxu0 0.0
        %726 = vmatpush2.msra.mxu0 0.0
        %727 = vmatprep.subr.mxu0 0.0
        %728 = vmatpush2.msra.mxu0 0.0
        %729 = vmatprep.subr.mxu0 0.0
        %730 = vmatpush2.msra.mxu0 0.0
        %731 = vmatprep.subr.mxu0 0.0
        %732 = vmatpush2.msra.mxu0 0.0
        %733 = vmatprep.mubr.f32.mxu0 0.0
        %734 = vmatmul.mubr.f32.gmra.mxu0 %v653
        %v735 = vpop.f32.mrf.mxu0
        %v736 = vadd.f32 0.0, %v735
        %v737 = vpop.f32.mrf.mxu0
        %738 = vmatprep.mubr.f32.mxu0 0.0
        %739 = vmatmul.mubr.f32.gmra.mxu0 %v654
        %v740 = vpop.f32.mrf.mxu0
        %v741 = vadd.f32 0.0, %v740
        %v742 = vpop.f32.mrf.mxu0
        %743 = vmatprep.mubr.f32.mxu0 0.0
        %744 = vmatmul.mubr.f32.gmra.mxu0 %v655
        %v745 = vpop.f32.mrf.mxu0
        %v746 = vadd.f32 0.0, %v745
        %v747 = vpop.f32.mrf.mxu0
        %748 = vmatprep.mubr.f32.mxu0 0.0
        %749 = vmatmul.mubr.f32.gmra.mxu0 %v656
        %v750 = vpop.f32.mrf.mxu0
        %v751 = vadd.f32 0.0, %v750
        %v752 = vpop.f32.mrf.mxu0
        %753 = vmatprep.mubr.f32.mxu0 0.0
        %754 = vmatmul.mubr.f32.gmra.mxu0 %v657
        %v755 = vpop.f32.mrf.mxu0
        %v756 = vadd.f32 0.0, %v755
        %v757 = vpop.f32.mrf.mxu0
        %758 = vmatprep.mubr.f32.mxu0 0.0
        %759 = vmatmul.mubr.f32.gmra.mxu0 %v658
        %v760 = vpop.f32.mrf.mxu0
        %v761 = vadd.f32 0.0, %v760
        %v762 = vpop.f32.mrf.mxu0
        %763 = vmatprep.mubr.f32.mxu0 0.0
        %764 = vmatmul.mubr.f32.gmra.mxu0 %v659
        %v765 = vpop.f32.mrf.mxu0
        %v766 = vadd.f32 0.0, %v765
        %v767 = vpop.f32.mrf.mxu0
        %768 = vmatprep.mubr.f32.mxu0 0.0
        %769 = vmatmul.mubr.f32.gmra.mxu0 %v660
        %v770 = vpop.f32.mrf.mxu0
        %v771 = vadd.f32 0.0, %v770
        %v772 = vpop.f32.mrf.mxu0
        %773 = vmatprep.mubr.f32.mxu0 0.0
        %774 = vmatmul.mubr.f32.gmra.mxu0 %v661
        %v775 = vpop.f32.mrf.mxu0
        %v776 = vadd.f32 0.0, %v775
        %v777 = vpop.f32.mrf.mxu0
        %778 = vmatprep.mubr.f32.mxu0 0.0
        %779 = vmatmul.mubr.f32.gmra.mxu0 %v662
        %v780 = vpop.f32.mrf.mxu0
        %v781 = vadd.f32 0.0, %v780
        %v782 = vpop.f32.mrf.mxu0
        %783 = vmatprep.mubr.f32.mxu0 0.0
        %784 = vmatmul.mubr.f32.gmra.mxu0 %v663
        %v785 = vpop.f32.mrf.mxu0
        %v786 = vadd.f32 0.0, %v785
        %v787 = vpop.f32.mrf.mxu0
        %788 = vmatprep.mubr.f32.mxu0 0.0
        %789 = vmatmul.mubr.f32.gmra.mxu0 %v664
        %v790 = vpop.f32.mrf.mxu0
        %v791 = vadd.f32 0.0, %v790
        %v792 = vpop.f32.mrf.mxu0
        %793 = vmatprep.mubr.f32.mxu0 0.0
        %794 = vmatmul.mubr.f32.gmra.mxu0 %v665
        %v795 = vpop.f32.mrf.mxu0
        %v796 = vadd.f32 0.0, %v795
        %v797 = vpop.f32.mrf.mxu0
        %798 = vmatprep.mubr.f32.mxu0 0.0
        %799 = vmatmul.mubr.f32.gmra.mxu0 %v666
        %v800 = vpop.f32.mrf.mxu0
        %v801 = vadd.f32 0.0, %v800
        %v802 = vpop.f32.mrf.mxu0
        %803 = vmatprep.mubr.f32.mxu0 0.0
        %804 = vmatmul.mubr.f32.gmra.mxu0 %v667
        %v805 = vpop.f32.mrf.mxu0
        %v806 = vadd.f32 0.0, %v805
        %v807 = vpop.f32.mrf.mxu0
        %808 = vmatprep.mubr.f32.mxu0 0.0
        %809 = vmatmul.mubr.f32.gmra.mxu0 %v668
        %v810 = vpop.f32.mrf.mxu0
        %v811 = vadd.f32 0.0, %v810
        %v812 = vpop.f32.mrf.mxu0
        %813 = vdwg.mxu0
        %814 = vmatprep.subr.mxu0 0.0
        %815 = vmatpush1.msra.mxu0 %v811
        %816 = vmatprep.subr.mxu0 0.0
        %817 = vmatpush1.msra.mxu0 %v806
        %818 = vmatprep.subr.mxu0 0.0
        %819 = vmatpush1.msra.mxu0 %v801
        %820 = vmatprep.subr.mxu0 0.0
        %821 = vmatpush1.msra.mxu0 %v796
        %822 = vmatprep.subr.mxu0 0.0
        %823 = vmatpush1.msra.mxu0 %v791
        %824 = vmatprep.subr.mxu0 0.0
        %825 = vmatpush1.msra.mxu0 %v786
        %826 = vmatprep.subr.mxu0 0.0
        %827 = vmatpush1.msra.mxu0 %v781
        %828 = vmatprep.subr.mxu0 0.0
        %829 = vmatpush1.msra.mxu0 %v776
        %830 = vmatprep.subr.mxu0 0.0
        %831 = vmatpush1.msra.mxu0 %v771
        %832 = vmatprep.subr.mxu0 0.0
        %833 = vmatpush1.msra.mxu0 %v766
        %834 = vmatprep.subr.mxu0 0.0
        %835 = vmatpush1.msra.mxu0 %v761
        %836 = vmatprep.subr.mxu0 0.0
        %837 = vmatpush1.msra.mxu0 %v756
        %838 = vmatprep.subr.mxu0 0.0
        %839 = vmatpush1.msra.mxu0 %v751
        %840 = vmatprep.subr.mxu0 0.0
        %841 = vmatpush1.msra.mxu0 %v746
        %842 = vmatprep.subr.mxu0 0.0
        %843 = vmatpush1.msra.mxu0 %v741
        %844 = vmatprep.subr.mxu0 0.0
        %845 = vmatpush1.msra.mxu0 %v736
        %846 = vmatprep.subr.mxu0 0.0
        %847 = vmatpush2.msra.mxu0 0.0
        %848 = vmatprep.subr.mxu0 0.0
        %849 = vmatpush2.msra.mxu0 0.0
        %850 = vmatprep.subr.mxu0 0.0
        %851 = vmatpush2.msra.mxu0 0.0
        %852 = vmatprep.subr.mxu0 0.0
        %853 = vmatpush2.msra.mxu0 0.0
        %854 = vmatprep.subr.mxu0 0.0
        %855 = vmatpush2.msra.mxu0 0.0
        %856 = vmatprep.subr.mxu0 0.0
        %857 = vmatpush2.msra.mxu0 0.0
        %858 = vmatprep.subr.mxu0 0.0
        %859 = vmatpush2.msra.mxu0 0.0
        %860 = vmatprep.subr.mxu0 0.0
        %861 = vmatpush2.msra.mxu0 0.0
        %862 = vmatprep.subr.mxu0 0.0
        %863 = vmatpush2.msra.mxu0 0.0
        %864 = vmatprep.subr.mxu0 0.0
        %865 = vmatpush2.msra.mxu0 0.0
        %866 = vmatprep.subr.mxu0 0.0
        %867 = vmatpush2.msra.mxu0 0.0
        %868 = vmatprep.subr.mxu0 0.0
        %869 = vmatpush2.msra.mxu0 0.0
        %870 = vmatprep.subr.mxu0 0.0
        %871 = vmatpush2.msra.mxu0 0.0
        %872 = vmatprep.subr.mxu0 0.0
        %873 = vmatpush2.msra.mxu0 0.0
        %874 = vmatprep.subr.mxu0 0.0
        %875 = vmatpush2.msra.mxu0 0.0
        %876 = vmatprep.subr.mxu0 0.0
        %877 = vmatpush2.msra.mxu0 0.0
        %878 = vmatprep.mubr.f32.mxu0 0.0
        %879 = vmatmul.mubr.f32.gmra.mxu0 %v622
        %v880 = vpop.f32.mrf.mxu0
        %v881 = vadd.f32 0.0, %v880
        %v882 = vpop.f32.mrf.mxu0
        %883 = vmatprep.mubr.f32.mxu0 0.0
        %884 = vmatmul.mubr.f32.gmra.mxu0 %v624
        %v885 = vpop.f32.mrf.mxu0
        %v886 = vadd.f32 0.0, %v885
        %v887 = vpop.f32.mrf.mxu0
        %888 = vmatprep.mubr.f32.mxu0 0.0
        %889 = vmatmul.mubr.f32.gmra.mxu0 %v626
        %v890 = vpop.f32.mrf.mxu0
        %v891 = vadd.f32 0.0, %v890
        %v892 = vpop.f32.mrf.mxu0
        %893 = vmatprep.mubr.f32.mxu0 0.0
        %894 = vmatmul.mubr.f32.gmra.mxu0 %v628
        %v895 = vpop.f32.mrf.mxu0
        %v896 = vadd.f32 0.0, %v895
        %v897 = vpop.f32.mrf.mxu0
        %898 = vmatprep.mubr.f32.mxu0 0.0
        %899 = vmatmul.mubr.f32.gmra.mxu0 %v630
        %v900 = vpop.f32.mrf.mxu0
        %v901 = vadd.f32 0.0, %v900
        %v902 = vpop.f32.mrf.mxu0
        %903 = vmatprep.mubr.f32.mxu0 0.0
        %904 = vmatmul.mubr.f32.gmra.mxu0 %v632
        %v905 = vpop.f32.mrf.mxu0
        %v906 = vadd.f32 0.0, %v905
        %v907 = vpop.f32.mrf.mxu0
        %908 = vmatprep.mubr.f32.mxu0 0.0
        %909 = vmatmul.mubr.f32.gmra.mxu0 %v634
        %v910 = vpop.f32.mrf.mxu0
        %v911 = vadd.f32 0.0, %v910
        %v912 = vpop.f32.mrf.mxu0
        %913 = vmatprep.mubr.f32.mxu0 0.0
        %914 = vmatmul.mubr.f32.gmra.mxu0 %v636
        %v915 = vpop.f32.mrf.mxu0
        %v916 = vadd.f32 0.0, %v915
        %v917 = vpop.f32.mrf.mxu0
        %918 = vmatprep.mubr.f32.mxu0 0.0
        %919 = vmatmul.mubr.f32.gmra.mxu0 %v638
        %v920 = vpop.f32.mrf.mxu0
        %v921 = vadd.f32 0.0, %v920
        %v922 = vpop.f32.mrf.mxu0
        %923 = vmatprep.mubr.f32.mxu0 0.0
        %924 = vmatmul.mubr.f32.gmra.mxu0 %v640
        %v925 = vpop.f32.mrf.mxu0
        %v926 = vadd.f32 0.0, %v925
        %v927 = vpop.f32.mrf.mxu0
        %928 = vmatprep.mubr.f32.mxu0 0.0
        %929 = vmatmul.mubr.f32.gmra.mxu0 %v642
        %v930 = vpop.f32.mrf.mxu0
        %v931 = vadd.f32 0.0, %v930
        %v932 = vpop.f32.mrf.mxu0
        %933 = vmatprep.mubr.f32.mxu0 0.0
        %934 = vmatmul.mubr.f32.gmra.mxu0 %v644
        %v935 = vpop.f32.mrf.mxu0
        %v936 = vadd.f32 0.0, %v935
        %v937 = vpop.f32.mrf.mxu0
        %938 = vmatprep.mubr.f32.mxu0 0.0
        %939 = vmatmul.mubr.f32.gmra.mxu0 %v646
        %v940 = vpop.f32.mrf.mxu0
        %v941 = vadd.f32 0.0, %v940
        %v942 = vpop.f32.mrf.mxu0
        %943 = vmatprep.mubr.f32.mxu0 0.0
        %944 = vmatmul.mubr.f32.gmra.mxu0 %v648
        %v945 = vpop.f32.mrf.mxu0
        %v946 = vadd.f32 0.0, %v945
        %v947 = vpop.f32.mrf.mxu0
        %948 = vmatprep.mubr.f32.mxu0 0.0
        %949 = vmatmul.mubr.f32.gmra.mxu0 %v650
        %v950 = vpop.f32.mrf.mxu0
        %v951 = vadd.f32 0.0, %v950
        %v952 = vpop.f32.mrf.mxu0
        %953 = vmatprep.mubr.f32.mxu0 0.0
        %954 = vmatmul.mubr.f32.gmra.mxu0 %v652
        %v955 = vpop.f32.mrf.mxu0
        %v956 = vadd.f32 0.0, %v955
        %v957 = vpop.f32.mrf.mxu0
        %958 = vdwg.mxu0
        %v959 = vmul.f32 %v454, %v881
        %v960 = vmul.f32 %v454, %v886
        %v961 = vmul.f32 %v454, %v891
        %v962 = vmul.f32 %v454, %v896
        %v963 = vmul.f32 %v454, %v901
        %v964 = vmul.f32 %v454, %v906
        %v965 = vmul.f32 %v454, %v911
        %v966 = vmul.f32 %v454, %v916
        %v967 = vmul.f32 %v454, %v921
        %v968 = vmul.f32 %v454, %v926
        %v969 = vmul.f32 %v454, %v931
        %v970 = vmul.f32 %v454, %v936
        %v971 = vmul.f32 %v454, %v941
        %v972 = vmul.f32 %v454, %v946
        %v973 = vmul.f32 %v454, %v951
        %v974 = vmul.f32 %v454, %v956
        %v975 = vmax.f32 %v653, %v657
        %v976 = vmax.f32 %v654, %v658
        %v977 = vmax.f32 %v655, %v659
        %v978 = vmax.f32 %v656, %v660
        %v979 = vmax.f32 %v975, %v661
        %v980 = vmax.f32 %v976, %v662
        %v981 = vmax.f32 %v977, %v663
        %v982 = vmax.f32 %v978, %v664
        %v983 = vmax.f32 %v979, %v665
        %v984 = vmax.f32 %v980, %v666
        %v985 = vmax.f32 %v981, %v667
        %v986 = vmax.f32 %v982, %v668
        %v987 = vmax.f32 %v983, %v984
        %v988 = vmax.f32 %v985, %v986
        %v989 = vmax.f32 %v987, %v988
        %990 = vmax.xlane.f32.xlu0 %v989
        %v991 = vpop.xlane.xlu0 %990
        %v992 = vrot.slane %v991, 4
        %v993 = vmax.f32 %v991, %v992
        %v994 = vrot.slane %v993, 2
        %v995 = vmax.f32 %v993, %v994
        %v996 = vrot.slane %v995, 1
        %v997 = vmax.f32 %v995, %v996
        %s998 = vtos %v997
        %s999 = ssub.f32 %s998, 0.001
        %v1000 = vstv %s999
        %vm1001 = vcmp.gt.f32.partialorder %v653, %v1000
        %vm1002 = vcmp.gt.f32.partialorder %v654, %v1000
        %vm1003 = vcmp.gt.f32.partialorder %v655, %v1000
        %vm1004 = vcmp.gt.f32.partialorder %v656, %v1000
        %vm1005 = vcmp.gt.f32.partialorder %v657, %v1000
        %vm1006 = vcmp.gt.f32.partialorder %v658, %v1000
        %vm1007 = vcmp.gt.f32.partialorder %v659, %v1000
        %vm1008 = vcmp.gt.f32.partialorder %v660, %v1000
        %vm1009 = vcmp.gt.f32.partialorder %v661, %v1000
        %vm1010 = vcmp.gt.f32.partialorder %v662, %v1000
        %vm1011 = vcmp.gt.f32.partialorder %v663, %v1000
        %vm1012 = vcmp.gt.f32.partialorder %v664, %v1000
        %vm1013 = vcmp.gt.f32.partialorder %v665, %v1000
        %vm1014 = vcmp.gt.f32.partialorder %v666, %v1000
        %vm1015 = vcmp.gt.f32.partialorder %v667, %v1000
        %vm1016 = vcmp.gt.f32.partialorder %v668, %v1000
        %v1017 = vsel %vm1001, 0.0, %v959
        %v1018 = vsel %vm1002, 0.0, %v960
        %v1019 = vsel %vm1003, 0.0, %v961
        %v1020 = vsel %vm1004, 0.0, %v962
        %v1021 = vsel %vm1005, 0.0, %v963
        %v1022 = vsel %vm1006, 0.0, %v964
        %v1023 = vsel %vm1007, 0.0, %v965
        %v1024 = vsel %vm1008, 0.0, %v966
        %v1025 = vsel %vm1009, 0.0, %v967
        %v1026 = vsel %vm1010, 0.0, %v968
        %v1027 = vsel %vm1011, 0.0, %v969
        %v1028 = vsel %vm1012, 0.0, %v970
        %v1029 = vsel %vm1013, 0.0, %v971
        %v1030 = vsel %vm1014, 0.0, %v972
        %v1031 = vsel %vm1015, 0.0, %v973
        %v1032 = vsel %vm1016, 0.0, %v974
        %v1033 = vmax.f32 %v1017, %v1021
        %v1034 = vmax.f32 %v1018, %v1022
        %v1035 = vmax.f32 %v1019, %v1023
        %v1036 = vmax.f32 %v1020, %v1024
        %v1037 = vmax.f32 %v1033, %v1025
        %v1038 = vmax.f32 %v1034, %v1026
        %v1039 = vmax.f32 %v1035, %v1027
        %v1040 = vmax.f32 %v1036, %v1028
        %v1041 = vmax.f32 %v1037, %v1029
        %v1042 = vmax.f32 %v1038, %v1030
        %v1043 = vmax.f32 %v1039, %v1031
        %v1044 = vmax.f32 %v1040, %v1032
        %v1045 = vmax.f32 %v1041, %v1042
        %v1046 = vmax.f32 %v1043, %v1044
        %v1047 = vmax.f32 %v1045, %v1046
        %1048 = vmax.xlane.f32.xlu0 %v1047
        %v1049 = vpop.xlane.xlu0 %1048
        %v1050 = vrot.slane %v1049, 4
        %v1051 = vmax.f32 %v1049, %v1050
        %v1052 = vrot.slane %v1051, 2
        %v1053 = vmax.f32 %v1051, %v1052
        %v1054 = vrot.slane %v1053, 1
        %v1055 = vmax.f32 %v1053, %v1054
        %s1056 = vtos %v1055
        %v1057 = vstv %s1056
        %v1058 = vsel %vm1001, %v1057, %v959
        %v1059 = vsel %vm1002, %v1057, %v960
        %v1060 = vsel %vm1003, %v1057, %v961
        %v1061 = vsel %vm1004, %v1057, %v962
        %v1062 = vsel %vm1005, %v1057, %v963
        %v1063 = vsel %vm1006, %v1057, %v964
        %v1064 = vsel %vm1007, %v1057, %v965
        %v1065 = vsel %vm1008, %v1057, %v966
        %v1066 = vsel %vm1009, %v1057, %v967
        %v1067 = vsel %vm1010, %v1057, %v968
        %v1068 = vsel %vm1011, %v1057, %v969
        %v1069 = vsel %vm1012, %v1057, %v970
        %v1070 = vsel %vm1013, %v1057, %v971
        %v1071 = vsel %vm1014, %v1057, %v972
        %v1072 = vsel %vm1015, %v1057, %v973
        %v1073 = vsel %vm1016, %v1057, %v974
        %1074 = vst [vmem:[%s364] sm:$0xff] %v1058
        %1075 = vst [vmem:[%s364 + $0x8] sm:$0xff] %v1059
        %1076 = vst [vmem:[%s364 + $0x10] sm:$0xff] %v1060
        %1077 = vst [vmem:[%s364 + $0x18] sm:$0xff] %v1061
        %1078 = vst [vmem:[%s364 + $0x20] sm:$0xff] %v1062
        %1079 = vst [vmem:[%s364 + $0x28] sm:$0xff] %v1063
        %1080 = vst [vmem:[%s364 + $0x30] sm:$0xff] %v1064
        %1081 = vst [vmem:[%s364 + $0x38] sm:$0xff] %v1065
        %1082 = vst [vmem:[%s364 + $0x40] sm:$0xff] %v1066
        %1083 = vst [vmem:[%s364 + $0x48] sm:$0xff] %v1067
        %1084 = vst [vmem:[%s364 + $0x50] sm:$0xff] %v1068
        %1085 = vst [vmem:[%s364 + $0x58] sm:$0xff] %v1069
        %1086 = vst [vmem:[%s364 + $0x60] sm:$0xff] %v1070
        %1087 = vst [vmem:[%s364 + $0x68] sm:$0xff] %v1071
        %1088 = vst [vmem:[%s364 + $0x70] sm:$0xff] %v1072
        %1089 = vst [vmem:[%s364 + $0x78] sm:$0xff] %v1073
        %v1090 = vld [vmem:[%s3] sm:$0xf]
        %v1091 = vstv %s384
        %v1092 = vmul.f32 %v1091, %v1090
        %v1093 = vmul.f32 %v1092, 1.442695
        %v1094 = vpow.pop %v1093
        %v1095 = vld [vmem:[%s4] sm:$0xff]
        %v1096 = vld [vmem:[%s4 + $0x8] sm:$0xff]
        %v1097 = vld [vmem:[%s4 + $0x10] sm:$0xff]
        %v1098 = vld [vmem:[%s4 + $0x18] sm:$0xff]
        %v1099 = vld [vmem:[%s4 + $0x20] sm:$0xff]
        %v1100 = vld [vmem:[%s4 + $0x28] sm:$0xff]
        %v1101 = vld [vmem:[%s4 + $0x30] sm:$0xff]
        %v1102 = vld [vmem:[%s4 + $0x38] sm:$0xff]
        %v1103 = vld [vmem:[%s4 + $0x40] sm:$0xff]
        %v1104 = vld [vmem:[%s4 + $0x48] sm:$0xff]
        %v1105 = vld [vmem:[%s4 + $0x50] sm:$0xff]
        %v1106 = vld [vmem:[%s4 + $0x58] sm:$0xff]
        %v1107 = vld [vmem:[%s4 + $0x60] sm:$0xff]
        %v1108 = vld [vmem:[%s4 + $0x68] sm:$0xff]
        %v1109 = vld [vmem:[%s4 + $0x70] sm:$0xff]
        %v1110 = vld [vmem:[%s4 + $0x78] sm:$0xff]
        %v1111 = vmul.f32 %v1091, %v1095
        %v1112 = vmul.f32 %v1091, %v1096
        %v1113 = vmul.f32 %v1091, %v1097
        %v1114 = vmul.f32 %v1091, %v1098
        %v1115 = vmul.f32 %v1091, %v1099
        %v1116 = vmul.f32 %v1091, %v1100
        %v1117 = vmul.f32 %v1091, %v1101
        %v1118 = vmul.f32 %v1091, %v1102
        %v1119 = vmul.f32 %v1091, %v1103
        %v1120 = vmul.f32 %v1091, %v1104
        %v1121 = vmul.f32 %v1091, %v1105
        %v1122 = vmul.f32 %v1091, %v1106
        %v1123 = vmul.f32 %v1091, %v1107
        %v1124 = vmul.f32 %v1091, %v1108
        %v1125 = vmul.f32 %v1091, %v1109
        %v1126 = vmul.f32 %v1091, %v1110
        %v1127 = vmul.f32 %v1111, 1.442695
        %v1128 = vpow.pop %v1127
        %v1129 = vmul.f32 %v1112, 1.442695
        %v1130 = vpow.pop %v1129
        %v1131 = vmul.f32 %v1113, 1.442695
        %v1132 = vpow.pop %v1131
        %v1133 = vmul.f32 %v1114, 1.442695
        %v1134 = vpow.pop %v1133
        %v1135 = vmul.f32 %v1115, 1.442695
        %v1136 = vpow.pop %v1135
        %v1137 = vmul.f32 %v1116, 1.442695
        %v1138 = vpow.pop %v1137
        %v1139 = vmul.f32 %v1117, 1.442695
        %v1140 = vpow.pop %v1139
        %v1141 = vmul.f32 %v1118, 1.442695
        %v1142 = vpow.pop %v1141
        %v1143 = vmul.f32 %v1119, 1.442695
        %v1144 = vpow.pop %v1143
        %v1145 = vmul.f32 %v1120, 1.442695
        %v1146 = vpow.pop %v1145
        %v1147 = vmul.f32 %v1121, 1.442695
        %v1148 = vpow.pop %v1147
        %v1149 = vmul.f32 %v1122, 1.442695
        %v1150 = vpow.pop %v1149
        %v1151 = vmul.f32 %v1123, 1.442695
        %v1152 = vpow.pop %v1151
        %v1153 = vmul.f32 %v1124, 1.442695
        %v1154 = vpow.pop %v1153
        %v1155 = vmul.f32 %v1125, 1.442695
        %v1156 = vpow.pop %v1155
        %v1157 = vmul.f32 %v1126, 1.442695
        %v1158 = vpow.pop %v1157
        %1159 = vmatprep.subr.mxu0 0.0
        %1160 = vmatpush1.msra.mxu0 %v1073
        %1161 = vmatprep.subr.mxu0 0.0
        %1162 = vmatpush1.msra.mxu0 %v1072
        %1163 = vmatprep.subr.mxu0 0.0
        %1164 = vmatpush1.msra.mxu0 %v1071
        %1165 = vmatprep.subr.mxu0 0.0
        %1166 = vmatpush1.msra.mxu0 %v1070
        %1167 = vmatprep.subr.mxu0 0.0
        %1168 = vmatpush1.msra.mxu0 %v1069
        %1169 = vmatprep.subr.mxu0 0.0
        %1170 = vmatpush1.msra.mxu0 %v1068
        %1171 = vmatprep.subr.mxu0 0.0
        %1172 = vmatpush1.msra.mxu0 %v1067
        %1173 = vmatprep.subr.mxu0 0.0
        %1174 = vmatpush1.msra.mxu0 %v1066
        %1175 = vmatprep.subr.mxu0 0.0
        %1176 = vmatpush1.msra.mxu0 %v1065
        %1177 = vmatprep.subr.mxu0 0.0
        %1178 = vmatpush1.msra.mxu0 %v1064
        %1179 = vmatprep.subr.mxu0 0.0
        %1180 = vmatpush1.msra.mxu0 %v1063
        %1181 = vmatprep.subr.mxu0 0.0
        %1182 = vmatpush1.msra.mxu0 %v1062
        %1183 = vmatprep.subr.mxu0 0.0
        %1184 = vmatpush1.msra.mxu0 %v1061
        %1185 = vmatprep.subr.mxu0 0.0
        %1186 = vmatpush1.msra.mxu0 %v1060
        %1187 = vmatprep.subr.mxu0 0.0
        %1188 = vmatpush1.msra.mxu0 %v1059
        %1189 = vmatprep.subr.mxu0 0.0
        %1190 = vmatpush1.msra.mxu0 %v1058
        %1191 = vmatprep.subr.mxu0 0.0
        %1192 = vmatpush2.msra.mxu0 0.0
        %1193 = vmatprep.subr.mxu0 0.0
        %1194 = vmatpush2.msra.mxu0 0.0
        %1195 = vmatprep.subr.mxu0 0.0
        %1196 = vmatpush2.msra.mxu0 0.0
        %1197 = vmatprep.subr.mxu0 0.0
        %1198 = vmatpush2.msra.mxu0 0.0
        %1199 = vmatprep.subr.mxu0 0.0
        %1200 = vmatpush2.msra.mxu0 0.0
        %1201 = vmatprep.subr.mxu0 0.0
        %1202 = vmatpush2.msra.mxu0 0.0
        %1203 = vmatprep.subr.mxu0 0.0
        %1204 = vmatpush2.msra.mxu0 0.0
        %1205 = vmatprep.subr.mxu0 0.0
        %1206 = vmatpush2.msra.mxu0 0.0
        %1207 = vmatprep.subr.mxu0 0.0
        %1208 = vmatpush2.msra.mxu0 0.0
        %1209 = vmatprep.subr.mxu0 0.0
        %1210 = vmatpush2.msra.mxu0 0.0
        %1211 = vmatprep.subr.mxu0 0.0
        %1212 = vmatpush2.msra.mxu0 0.0
        %1213 = vmatprep.subr.mxu0 0.0
        %1214 = vmatpush2.msra.mxu0 0.0
        %1215 = vmatprep.subr.mxu0 0.0
        %1216 = vmatpush2.msra.mxu0 0.0
        %1217 = vmatprep.subr.mxu0 0.0
        %1218 = vmatpush2.msra.mxu0 0.0
        %1219 = vmatprep.subr.mxu0 0.0
        %1220 = vmatpush2.msra.mxu0 0.0
        %1221 = vmatprep.subr.mxu0 0.0
        %1222 = vmatpush2.msra.mxu0 0.0
        %1223 = vmatprep.mubr.f32.mxu0 0.0
        %1224 = vmatmul.mubr.f32.gmra.mxu0 %v1094
        %v1225 = vpop.f32.mrf.mxu0
        %v1226 = vadd.f32 0.0, %v1225
        %v1227 = vpop.f32.mrf.mxu0
        %1228 = vdwg.mxu0
        %1229 = vmatprep.subr.mxu0 0.0
        %1230 = vmatpush1.msra.mxu0 %v1158
        %1231 = vmatprep.subr.mxu0 0.0
        %1232 = vmatpush1.msra.mxu0 %v1156
        %1233 = vmatprep.subr.mxu0 0.0
        %1234 = vmatpush1.msra.mxu0 %v1154
        %1235 = vmatprep.subr.mxu0 0.0
        %1236 = vmatpush1.msra.mxu0 %v1152
        %1237 = vmatprep.subr.mxu0 0.0
        %1238 = vmatpush1.msra.mxu0 %v1150
        %1239 = vmatprep.subr.mxu0 0.0
        %1240 = vmatpush1.msra.mxu0 %v1148
        %1241 = vmatprep.subr.mxu0 0.0
        %1242 = vmatpush1.msra.mxu0 %v1146
        %1243 = vmatprep.subr.mxu0 0.0
        %1244 = vmatpush1.msra.mxu0 %v1144
        %1245 = vmatprep.subr.mxu0 0.0
        %1246 = vmatpush1.msra.mxu0 %v1142
        %1247 = vmatprep.subr.mxu0 0.0
        %1248 = vmatpush1.msra.mxu0 %v1140
        %1249 = vmatprep.subr.mxu0 0.0
        %1250 = vmatpush1.msra.mxu0 %v1138
        %1251 = vmatprep.subr.mxu0 0.0
        %1252 = vmatpush1.msra.mxu0 %v1136
        %1253 = vmatprep.subr.mxu0 0.0
        %1254 = vmatpush1.msra.mxu0 %v1134
        %1255 = vmatprep.subr.mxu0 0.0
        %1256 = vmatpush1.msra.mxu0 %v1132
        %1257 = vmatprep.subr.mxu0 0.0
        %1258 = vmatpush1.msra.mxu0 %v1130
        %1259 = vmatprep.subr.mxu0 0.0
        %1260 = vmatpush1.msra.mxu0 %v1128
        %1261 = vmatprep.subr.mxu0 0.0
        %1262 = vmatpush2.msra.mxu0 0.0
        %1263 = vmatprep.subr.mxu0 0.0
        %1264 = vmatpush2.msra.mxu0 0.0
        %1265 = vmatprep.subr.mxu0 0.0
        %1266 = vmatpush2.msra.mxu0 0.0
        %1267 = vmatprep.subr.mxu0 0.0
        %1268 = vmatpush2.msra.mxu0 0.0
        %1269 = vmatprep.subr.mxu0 0.0
        %1270 = vmatpush2.msra.mxu0 0.0
        %1271 = vmatprep.subr.mxu0 0.0
        %1272 = vmatpush2.msra.mxu0 0.0
        %1273 = vmatprep.subr.mxu0 0.0
        %1274 = vmatpush2.msra.mxu0 0.0
        %1275 = vmatprep.subr.mxu0 0.0
        %1276 = vmatpush2.msra.mxu0 0.0
        %1277 = vmatprep.subr.mxu0 0.0
        %1278 = vmatpush2.msra.mxu0 0.0
        %1279 = vmatprep.subr.mxu0 0.0
        %1280 = vmatpush2.msra.mxu0 0.0
        %1281 = vmatprep.subr.mxu0 0.0
        %1282 = vmatpush2.msra.mxu0 0.0
        %1283 = vmatprep.subr.mxu0 0.0
        %1284 = vmatpush2.msra.mxu0 0.0
        %1285 = vmatprep.subr.mxu0 0.0
        %1286 = vmatpush2.msra.mxu0 0.0
        %1287 = vmatprep.subr.mxu0 0.0
        %1288 = vmatpush2.msra.mxu0 0.0
        %1289 = vmatprep.subr.mxu0 0.0
        %1290 = vmatpush2.msra.mxu0 0.0
        %1291 = vmatprep.subr.mxu0 0.0
        %1292 = vmatpush2.msra.mxu0 0.0
        %1293 = vmatprep.mubr.f32.mxu0 0.0
        %1294 = vmatmul.mubr.f32.gmra.mxu0 %v1226
        %v1295 = vpop.f32.mrf.mxu0
        %v1296 = vadd.f32 0.0, %v1295
        %v1297 = vpop.f32.mrf.mxu0
        %1298 = vdwg.mxu0
        %v1299 = vadd.f32 %v1058, %v1059
        %v1300 = vadd.f32 %v1299, %v1060
        %v1301 = vadd.f32 %v1300, %v1061
        %v1302 = vadd.f32 %v1301, %v1062
        %v1303 = vadd.f32 %v1302, %v1063
        %v1304 = vadd.f32 %v1303, %v1064
        %v1305 = vadd.f32 %v1304, %v1065
        %v1306 = vadd.f32 %v1305, %v1066
        %v1307 = vadd.f32 %v1306, %v1067
        %v1308 = vadd.f32 %v1307, %v1068
        %v1309 = vadd.f32 %v1308, %v1069
        %v1310 = vadd.f32 %v1309, %v1070
        %v1311 = vadd.f32 %v1310, %v1071
        %v1312 = vadd.f32 %v1311, %v1072
        %v1313 = vadd.f32 %v1312, %v1073
        %1314 = vadd.xlane.f32.xlu0 %v1313
        %v1315 = vpop.xlane.xlu0 %1314
        %v1316 = vrot.slane %v1315, 4
        %v1317 = vadd.f32 %v1315, %v1316
        %v1318 = vrot.slane %v1317, 2
        %v1319 = vadd.f32 %v1317, %v1318
        %v1320 = vrot.slane %v1319, 1
        %v1321 = vadd.f32 %v1319, %v1320
        %s1322 = vtos %v1321
        %v1323 = vstv %s375
        %v1324 = vrcp.pop %v1323
        %v1325 = vmul.f32 -100.0, %v1324
        %v1326 = vmul.f32 %v1325, 1.442695
        %v1327 = vpow.pop %v1326
        %v1328 = vstv %s1322
        %v1329 = vmul.f32 %v1327, %v1328
        %v1330 = vsub.f32 %v1296, %v1329
        %v1331 = vsub.f32 1.0, %v1327
        %v1332 = vrcp.pop %v1331
        %v1333 = vmul.f32 %v1330, %v1332
        %v1334 = vmul.f32 %v1333, 0.0001
        %vm1335 = vcmask 27648
        %1336 = vst.msk [vmem:[%s347] sm:$0xf] %vm1335, %v1334
        %p1337 = scmp.lt.s32.totalorder %s25, 1
        %s1338 = scalar_select %p1337, %s25, 1
        %s1339 = smul.addr %s1338, 16
        %s1340 = smul.addr %s1339, 8
        %s1341 = scalar_lea.vmem %s7, %s1340
        %s1342 = sand.u32 %s211, 1
        %s1343 = scalar_lea.sflag [#allocation3], %s1342
        %s1344 = sand.u32 %s211, 1
        %s1345 = smul.addr %s1344, 4
        %s1346 = scalar_lea.vmem [#allocation5], %s1345
        %p1347 = scmp.lt.s32.totalorder %s25, 1
        %s1348 = scalar_select %p1347, %s25, 1
        %s1349 = smul.addr %s1348, 16
        %s1350 = smul.addr %s1349, 8
        %s1351 = scalar_lea.vmem %s9, %s1350
        // Predicated region
        $region53: #{_lambda_.1} parent=47 // pred_check
          %p1352 = pneg %p195
        $region54: #{_lambda_.1} parent=47 // pred_check_branch
          %1354 = sbr.rel (%p1352) target = $region56
        $region55: #{_lambda_.1} parent=47 // pred_region
          _
        $region56: #{_lambda_.1} parent=47 // pred_fallthru
          _
        // Predicated region
        $region57: #{_lambda_.1} parent=47 // pred_check
          %p1355 = pneg %p221
        $region58: #{_lambda_.1} parent=47 // pred_check_branch
          %1357 = sbr.rel (%p1355) target = $region60
        $region59: #{_lambda_.1} parent=47 // pred_region
          %s1359 = ssub.s32 64, 64
          %1360 = vsyncadd %s1343, %s1359
          %s1361 = smul.addr %s25, 64
          %s1362 = scalar_lea.hbm %s8, %s1361
          %s1364 = sshll.u32 %s1346, 4
          %s1365 = int_to_ptr.vmem [resolvable:$true] %s1364
          %1367 = dma.vmem_to_hbm [thread:$0]  %s1365, 64, %s1362, %s1343
        $region60: #{_lambda_.1} parent=47 // pred_fallthru
          _
        // Predicated region
        $region61: #{_lambda_.1} parent=47 // pred_check
          %p1368 = pneg %p247
        $region62: #{_lambda_.1} parent=47 // pred_check_branch
          %1370 = sbr.rel (%p1368) target = $region64
        $region63: #{_lambda_.1} parent=47 // pred_region
          _
        $region64: #{_lambda_.1} parent=47 // pred_fallthru
          _
      $region48: #{_lambda_.1} parent=5 // pred_fallthru
        _
      %p1371 = scmp.le.s32.totalorder 2, %s20
      // Predicated region
      $region65: #{_lambda_.1} parent=5 // pred_check
        %p1372 = pneg %p1371
      $region66: #{_lambda_.1} parent=5 // pred_check_branch
        %1374 = sbr.rel (%p1372) target = $region68
      $region67: #{_lambda_.1} parent=5 // pred_region
        %s1375 = ssub.s32 %s20, 2
        // Predicated region
        $region69: #{_lambda_.1} parent=67 // pred_check
          %p1376 = pneg %p201
        $region70: #{_lambda_.1} parent=67 // pred_check_branch
          %1378 = sbr.rel (%p1376) target = $region72
        $region71: #{_lambda_.1} parent=67 // pred_region
          %p1379 = scmp.lt.s32.totalorder %s26, 1
          %s1380 = scalar_select %p1379, %s26, 1
          %s1381 = smul.addr %s1380, 16
          %s1382 = smul.addr %s1381, 8
          %s1383 = scalar_lea.vmem %s7, %s1382
        $region72: #{_lambda_.1} parent=67 // pred_fallthru
          _
        // Predicated region
        $region73: #{_lambda_.1} parent=67 // pred_check
          %p1384 = pneg %p227
        $region74: #{_lambda_.1} parent=67 // pred_check_branch
          %1386 = sbr.rel (%p1384) target = $region76
        $region75: #{_lambda_.1} parent=67 // pred_region
          %s1387 = sand.u32 %s212, 1
          %s1388 = scalar_lea.sflag [#allocation3], %s1387
          %s1389 = sand.u32 %s212, 1
          %s1390 = smul.addr %s1389, 4
          %s1391 = scalar_lea.vmem [#allocation5], %s1390
          %1392 = dma.done %s1388, 64
        $region76: #{_lambda_.1} parent=67 // pred_fallthru
          _
        // Predicated region
        $region77: #{_lambda_.1} parent=67 // pred_check
          %p1393 = pneg %p253
        $region78: #{_lambda_.1} parent=67 // pred_check_branch
          %1395 = sbr.rel (%p1393) target = $region80
        $region79: #{_lambda_.1} parent=67 // pred_region
          %p1396 = scmp.lt.s32.totalorder %s26, 1
          %s1397 = scalar_select %p1396, %s26, 1
          %s1398 = smul.addr %s1397, 16
          %s1399 = smul.addr %s1398, 8
          %s1400 = scalar_lea.vmem %s9, %s1399
        $region80: #{_lambda_.1} parent=67 // pred_fallthru
          _
      $region68: #{_lambda_.1} parent=5 // pred_fallthru
        _
    $region6: #{_lambda_.1} parent=1 // loop_footer
      %s24 = sadd.s32 1, %s20
    $region7: #{_lambda_.1} parent=1 // loop_footer_branch
      %19 = sbr.rel target = $region3
    $region8: #{_lambda_.1} parent=1 // loop_exit
      _
    %1401 = vsyncpa [#allocation3], 1
    %s1402 = scalar_lea.sflag [#allocation3], 1
    %1403 = vsyncpa %s1402, 1
    %1404 = vsyncpa [#allocation4], 1
    %s1405 = scalar_lea.sflag [#allocation4], 1
    %1406 = vsyncpa %s1405, 1

</llo_original>
